<compile_context>
chip_gen: v7x
topology: tpu7x:2x2x1
jax: 0.10.0
libtpu: 0.0.40
codegen_flags: <defaults>
</compile_context>

<pallas_src>
import functools

import jax
import jax.numpy as jnp
from jax import lax
from jax.experimental import pallas as pl
from jax.experimental.pallas import tpu as pltpu

BN_EPS = 1e-5
NEG_SLOPE = 0.2


def _round_up(x, m):
    return (x + m - 1) // m * m


def _largest_divisor_leq(x, ub):
    ub = max(1, min(x, ub))
    for d in range(ub, 0, -1):
        if x % d == 0:
            return d
    return 1


# ---------------------------------------------------------------------------
# Pass 1: in-VMEM patch extraction + conv (16 small MXU matmuls, f32 acc)
#         + per-tile per-channel partial sum / sumsq.
# x_ref : (1, 4, Hq, Wq, Cin) bf16 -- whole phase-split padded image, resident.
# w_ref : (16, Cin, Cp)       bf16 -- per-(kh,kw) weight tiles, resident.
# ---------------------------------------------------------------------------
def _conv_stats_kernel(x_ref, w_ref, conv_ref, psum_ref, psq_ref,
                       *, th, wo, cin, cpad):
    tm = th * wo
    ho0 = pl.program_id(1) * th                       # first output row of tile
    acc = jnp.zeros((tm, cpad), jnp.float32)
    for kh in range(4):
        for kw in range(4):
            p, dh = kh % 2, kh // 2
            q, dw = kw % 2, kw // 2
            # Contiguous slice: all (ho, wo) positions of this tile for the
            # (kh, kw) tap -> (TH, Wo, Cin), then a trivial row merge.
            lhs = x_ref[0, p * 2 + q, pl.ds(ho0 + dh, th), pl.ds(dw, wo), :]
            lhs = lhs.reshape(tm, cin)
            acc = acc + jnp.dot(lhs, w_ref[kh * 4 + kw],
                                preferred_element_type=jnp.float32)

    # bf16 storage of the intermediate activation (review item 2).
    conv_ref[...] = acc.astype(conv_ref.dtype).reshape(1, tm, cpad)

    # Per-tile partial batch statistics in f32; (1,1,8,Cp) blocks are
    # sublane-aligned, only row 0 is consumed by the wrapper.
    s = jnp.sum(acc, axis=0).reshape(1, 1, 1, cpad)
    sq = jnp.sum(acc * acc, axis=0).reshape(1, 1, 1, cpad)
    psum_ref[...] = jnp.broadcast_to(s, (1, 1, 8, cpad))
    psq_ref[...] = jnp.broadcast_to(sq, (1, 1, 8, cpad))


# ---------------------------------------------------------------------------
# Pass 2: folded BatchNorm (single FMA) + LeakyReLU, in place over the bf16
#         conv buffer (input_output_aliases={0: 0}).
# ---------------------------------------------------------------------------
def _bn_lrelu_kernel(conv_ref, scale_ref, shift_ref, o_ref):
    y = conv_ref[...].astype(jnp.float32) * scale_ref[...] + shift_ref[...]
    o_ref[...] = jnp.where(y >= 0, y, NEG_SLOPE * y).astype(o_ref.dtype)


@functools.partial(jax.jit, static_argnames=("tm", "out_layout"))
def encode_layer(x_nchw, w_oihw, gamma, beta, *, tm=1024, out_layout="NCHW"):
    """Pallas implementation of _EncodeLayer.forward (batch_normalize=True)."""
    n, cin, h, w = x_nchw.shape
    cout = w_oihw.shape[0]
    assert w_oihw.shape == (cout, cin, 4, 4)
    assert h % 2 == 0 and w % 2 == 0
    ho, wo = h // 2, w // 2
    hq, wq = ho + 1, wo + 1            # phase-split padded spatial extents
    cpad = _round_up(cout, 128)        # lane-dense output channels

    # ---- wrapper relayout (input-sized, replaces the 16x im2col round trip) --
    xp = jnp.pad(x_nchw, ((0, 0), (0, 0), (1, 1), (1, 1)))     # (N,Cin,H+2,W+2)
    xq = xp.transpose(0, 2, 3, 1)                              # (N,Hp,Wp,Cin)
    xq = xq.reshape(n, hq, 2, wq, 2, cin).transpose(0, 2, 4, 1, 3, 5)
    xq = xq.reshape(n, 4, hq, wq, cin).astype(jnp.bfloat16)    # X[n,2p+q,i,j,c]

    # Weights: OIHW -> 16 x (Cin, Cout_pad) tiles; K (=Cin) is never padded.
    wt = w_oihw.transpose(2, 3, 1, 0).reshape(16, cin, cout)
    wt = jnp.pad(wt, ((0, 0), (0, 0), (0, cpad - cout))).astype(jnp.bfloat16)

    # ---- Pass-1 tiling: TH output rows per step, TH | Ho ---------------------
    th = _largest_divisor_leq(ho, max(1, tm // wo))
    nt = ho // th
    tm1 = th * wo                              # rows per pass-1 grid step

    # Scoped-VMEM estimate (lane/sublane padded, double-buffered where it is).
    x_blk = 4 * hq * _round_up(wq, 16) * _round_up(cin, 128) * 2
    w_blk = 16 * _round_up(cin, 16) * cpad * 2
    c_blk = _round_up(tm1, 16) * cpad * 2
    est = 2 * x_blk + 2 * w_blk + 2 * c_blk + tm1 * cpad * 4 + (1 << 20)
    vmem_limit = min(int(est * 1.5), 64 * 1024 * 1024) if est > 12 * 2**20 else None

    # -------- Pass 1: conv + partial batch statistics -------------------------
    conv, psum, psq = pl.pallas_call(
        functools.partial(_conv_stats_kernel, th=th, wo=wo, cin=cin, cpad=cpad),
        out_shape=(
            jax.ShapeDtypeStruct((n * nt, tm1, cpad), jnp.bfloat16),
            jax.ShapeDtypeStruct((n, nt, 8, cpad), jnp.float32),
            jax.ShapeDtypeStruct((n, nt, 8, cpad), jnp.float32),
        ),
        grid_spec=pltpu.PrefetchScalarGridSpec(
            num_scalar_prefetch=0,
            grid=(n, nt),
            in_specs=[
                # Whole phase-split image resident per batch element (re-fetched
                # only when the n axis advances).
                pl.BlockSpec((1, 4, hq, wq, cin), lambda i, t: (i, 0, 0, 0, 0)),
                # Weight tiles: constant index -> fetched once.
                pl.BlockSpec((16, cin, cpad), lambda i, t: (0, 0, 0)),
            ],
            out_specs=(
                pl.BlockSpec((1, tm1, cpad), lambda i, t: (i * nt + t, 0, 0)),
                pl.BlockSpec((1, 1, 8, cpad), lambda i, t: (i, t, 0, 0)),
                pl.BlockSpec((1, 1, 8, cpad), lambda i, t: (i, t, 0, 0)),
            ),
        ),
        compiler_params=pltpu.CompilerParams(
            dimension_semantics=("parallel", "parallel"),
            vmem_limit_bytes=vmem_limit),
    )(xq, wt)

    # -------- Tiny per-channel math: batch stats -> folded scale/shift --------
    m_true = n * ho * wo
    tot = psum[:, :, 0, :].sum(axis=(0, 1))                    # (Cp,)
    tot2 = psq[:, :, 0, :].sum(axis=(0, 1))                    # (Cp,)
    mean = tot / m_true
    # TODO(synk): E[x^2]-E[x]^2 in f32 can cancel for |mean| >> std; switch to
    #             shifted sums if a layer ever hits that regime.
    var = jnp.maximum(tot2 / m_true - mean * mean, 0.0)
    gamma_p = jnp.pad(gamma.astype(jnp.float32), (0, cpad - cout))
    beta_p = jnp.pad(beta.astype(jnp.float32), (0, cpad - cout))
    scale = gamma_p * lax.rsqrt(var + BN_EPS)
    shift = beta_p - mean * scale

    # -------- Pass 2: normalize + LeakyReLU, in place, large streaming tiles --
    r = n * nt
    g_cap = min(max(1, 4096 // tm1), max(1, (3 * 2**20) // (tm1 * cpad * 2)))
    g = _largest_divisor_leq(r, g_cap)                         # tiles per step
    out3 = pl.pallas_call(
        _bn_lrelu_kernel,
        out_shape=jax.ShapeDtypeStruct((r, tm1, cpad), jnp.bfloat16),
        grid_spec=pltpu.PrefetchScalarGridSpec(
            num_scalar_prefetch=0,
            grid=(r // g,),
            in_specs=[
                pl.BlockSpec((g, tm1, cpad), lambda i: (i, 0, 0)),
                pl.BlockSpec((1, cpad), lambda i: (0, 0)),
                pl.BlockSpec((1, cpad), lambda i: (0, 0)),
            ],
            out_specs=pl.BlockSpec((g, tm1, cpad), lambda i: (i, 0, 0)),
        ),
        compiler_params=pltpu.CompilerParams(
            dimension_semantics=("parallel",)),
        input_output_aliases={0: 0},
    )(conv, scale.reshape(1, cpad), shift.reshape(1, cpad))

    # Strip channel padding; rows are already exact (no M padding by design).
    out_nhwc = out3.reshape(n, nt, th, wo, cpad).reshape(n, ho, wo, cpad)
    out_nhwc = out_nhwc[..., :cout]
    if out_layout == "NHWC":
        return out_nhwc.astype(jnp.float32)
    # Default: PyTorch NCHW output layout (review item 8: consumers that can
    # take NHWC should pass out_layout="NHWC" and skip this transpose).
    return out_nhwc.transpose(0, 3, 1, 2).astype(jnp.float32)


def _reference(x_nchw, w_oihw, gamma, beta):
    """Pure-JAX reference mirroring PyTorch semantics (f32 throughout)."""
    y = lax.conv_general_dilated(
        x_nchw, w_oihw, window_strides=(2, 2), padding=((1, 1), (1, 1)),
        dimension_numbers=("NCHW", "OIHW", "NCHW"))
    mean = jnp.mean(y, axis=(0, 2, 3), keepdims=True)
    var = jnp.mean((y - mean) ** 2, axis=(0, 2, 3), keepdims=True)
    yn = (y - mean) / jnp.sqrt(var + BN_EPS)
    yn = yn * gamma.reshape(1, -1, 1, 1) + beta.reshape(1, -1, 1, 1)
    return jnp.where(yn >= 0, yn, NEG_SLOPE * yn)


if __name__ == "__main__":
    key = jax.random.PRNGKey(0)
    k_x, k_w, k_g, k_b = jax.random.split(key, 4)

    N, C_IN, H, W = 2, 4, 16, 16
    C_OUT = 8

    x = jax.random.normal(k_x, (N, C_IN, H, W), dtype=jnp.float32)
    # Deterministic synthetic params (Conv2d has bias=False in the module).
    w = 0.1 * jax.random.normal(k_w, (C_OUT, C_IN, 4, 4), dtype=jnp.float32)
    gamma = 1.0 + 0.1 * jax.random.normal(k_g, (C_OUT,), dtype=jnp.float32)
    beta = 0.1 * jax.random.normal(k_b, (C_OUT,), dtype=jnp.float32)

    # tm=32 forces 2 row-tiles per image (exercises the dynamic row offsets and
    # the pass-2 tile grouping); realistic encoder shapes use the default 1024.
    out = encode_layer(x, w, gamma, beta, tm=32)
    out = jax.block_until_ready(out)

    ref = _reference(x, w, gamma, beta)
    assert out.shape == (N, C_OUT, H // 2, W // 2), out.shape
    max_err = float(jnp.max(jnp.abs(out - ref)))
    # bf16 matmul inputs + bf16 activation storage (f32 accumulation/statistics)
    # -> relaxed tolerance vs the f32 reference.
    assert jnp.allclose(out, ref, atol=3e-2, rtol=3e-2), max_err

    print("KERNEL_OK")
</pallas_src>

<mosaic_0001>
module attributes {stable_mosaic.version = 11 : i64} {
  func.func @_conv_stats_kernel(%arg0: i32, %arg1: i32, %arg2: memref<1x4x9x9x4xbf16, #tpu.memory_space<vmem>>, %arg3: memref<16x4x128xbf16, #tpu.memory_space<vmem>>, %arg4: memref<1x32x128xbf16, #tpu.memory_space<vmem>>, %arg5: memref<1x1x8x128xf32, #tpu.memory_space<vmem>>, %arg6: memref<1x1x8x128xf32, #tpu.memory_space<vmem>>) attributes {dimension_semantics = [#tpu.dimension_semantics<parallel>, #tpu.dimension_semantics<parallel>], iteration_bounds = array<i64: 2, 2>, scalar_prefetch = 0 : i64, scratch_operands = 0 : i64, tpu.core_type = #tpu.core_type<tc>, window_params = [{transform_indices = @transform_0, window_bounds = array<i64: 1, 4, 9, 9, 4>}, {pipeline_mode = #tpu.pipeline_mode<synchronous>, transform_indices = @transform_1, window_bounds = array<i64: 16, 4, 128>}, {transform_indices = @transform_2, window_bounds = array<i64: 1, 32, 128>}, {transform_indices = @transform_3, window_bounds = array<i64: 1, 1, 8, 128>}, {transform_indices = @transform_4, window_bounds = array<i64: 1, 1, 8, 128>}]} {
    %c4_i32 = arith.constant 4 : i32
    %0 = arith.muli %arg1, %c4_i32 : i32
    %cst = arith.constant 0.000000e+00 : f32
    %1 = vector.broadcast %cst : f32 to vector<32x128xf32>
    %c0_i32 = arith.constant 0 : i32
    %2 = arith.addi %0, %c0_i32 : i32
    %c0 = arith.constant 0 : index
    %c0_0 = arith.constant 0 : index
    %3 = arith.index_cast %2 : i32 to index
    %c0_1 = arith.constant 0 : index
    %c0_2 = arith.constant 0 : index
    %4 = vector.load %arg2[%c0, %c0_0, %3, %c0_1, %c0_2] : memref<1x4x9x9x4xbf16, #tpu.memory_space<vmem>>, vector<1x1x4x8x4xbf16>
    %5 = vector.shape_cast %4 : vector<1x1x4x8x4xbf16> to vector<4x8x4xbf16>
    %6 = vector.shape_cast %5 : vector<4x8x4xbf16> to vector<32x4xbf16>
    %c0_3 = arith.constant 0 : index
    %c0_4 = arith.constant 0 : index
    %c0_5 = arith.constant 0 : index
    %7 = vector.load %arg3[%c0_3, %c0_4, %c0_5] : memref<16x4x128xbf16, #tpu.memory_space<vmem>>, vector<1x4x128xbf16>
    %8 = vector.shape_cast %7 : vector<1x4x128xbf16> to vector<4x128xbf16>
    %cst_6 = arith.constant dense<0.000000e+00> : vector<32x128xf32>
    %9 = tpu.matmul %6, %8, %cst_6 {dimension_numbers = #tpu.dot_dimension_numbers<[1], [0], [0], [1], [0, 0, 1, 1], [], []>} : vector<32x4xbf16>, vector<4x128xbf16>, vector<32x128xf32> -> vector<32x128xf32>
    %10 = arith.addf %1, %9 : vector<32x128xf32>
    %c0_i32_7 = arith.constant 0 : i32
    %11 = arith.addi %0, %c0_i32_7 : i32
    %c0_8 = arith.constant 0 : index
    %c1 = arith.constant 1 : index
    %12 = arith.index_cast %11 : i32 to index
    %c0_9 = arith.constant 0 : index
    %c0_10 = arith.constant 0 : index
    %13 = vector.load %arg2[%c0_8, %c1, %12, %c0_9, %c0_10] : memref<1x4x9x9x4xbf16, #tpu.memory_space<vmem>>, vector<1x1x4x8x4xbf16>
    %14 = vector.shape_cast %13 : vector<1x1x4x8x4xbf16> to vector<4x8x4xbf16>
    %15 = vector.shape_cast %14 : vector<4x8x4xbf16> to vector<32x4xbf16>
    %c1_11 = arith.constant 1 : index
    %c0_12 = arith.constant 0 : index
    %c0_13 = arith.constant 0 : index
    %16 = vector.load %arg3[%c1_11, %c0_12, %c0_13] : memref<16x4x128xbf16, #tpu.memory_space<vmem>>, vector<1x4x128xbf16>
    %17 = vector.shape_cast %16 : vector<1x4x128xbf16> to vector<4x128xbf16>
    %cst_14 = arith.constant dense<0.000000e+00> : vector<32x128xf32>
    %18 = tpu.matmul %15, %17, %cst_14 {dimension_numbers = #tpu.dot_dimension_numbers<[1], [0], [0], [1], [0, 0, 1, 1], [], []>} : vector<32x4xbf16>, vector<4x128xbf16>, vector<32x128xf32> -> vector<32x128xf32>
    %19 = arith.addf %10, %18 : vector<32x128xf32>
    %c0_i32_15 = arith.constant 0 : i32
    %20 = arith.addi %0, %c0_i32_15 : i32
    %c0_16 = arith.constant 0 : index
    %c0_17 = arith.constant 0 : index
    %21 = arith.index_cast %20 : i32 to index
    %c1_18 = arith.constant 1 : index
    %c0_19 = arith.constant 0 : index
    %22 = vector.load %arg2[%c0_16, %c0_17, %21, %c1_18, %c0_19] : memref<1x4x9x9x4xbf16, #tpu.memory_space<vmem>>, vector<1x1x4x8x4xbf16>
    %23 = vector.shape_cast %22 : vector<1x1x4x8x4xbf16> to vector<4x8x4xbf16>
    %24 = vector.shape_cast %23 : vector<4x8x4xbf16> to vector<32x4xbf16>
    %c2 = arith.constant 2 : index
    %c0_20 = arith.constant 0 : index
    %c0_21 = arith.constant 0 : index
    %25 = vector.load %arg3[%c2, %c0_20, %c0_21] : memref<16x4x128xbf16, #tpu.memory_space<vmem>>, vector<1x4x128xbf16>
    %26 = vector.shape_cast %25 : vector<1x4x128xbf16> to vector<4x128xbf16>
    %cst_22 = arith.constant dense<0.000000e+00> : vector<32x128xf32>
    %27 = tpu.matmul %24, %26, %cst_22 {dimension_numbers = #tpu.dot_dimension_numbers<[1], [0], [0], [1], [0, 0, 1, 1], [], []>} : vector<32x4xbf16>, vector<4x128xbf16>, vector<32x128xf32> -> vector<32x128xf32>
    %28 = arith.addf %19, %27 : vector<32x128xf32>
    %c0_i32_23 = arith.constant 0 : i32
    %29 = arith.addi %0, %c0_i32_23 : i32
    %c0_24 = arith.constant 0 : index
    %c1_25 = arith.constant 1 : index
    %30 = arith.index_cast %29 : i32 to index
    %c1_26 = arith.constant 1 : index
    %c0_27 = arith.constant 0 : index
    %31 = vector.load %arg2[%c0_24, %c1_25, %30, %c1_26, %c0_27] : memref<1x4x9x9x4xbf16, #tpu.memory_space<vmem>>, vector<1x1x4x8x4xbf16>
    %32 = vector.shape_cast %31 : vector<1x1x4x8x4xbf16> to vector<4x8x4xbf16>
    %33 = vector.shape_cast %32 : vector<4x8x4xbf16> to vector<32x4xbf16>
    %c3 = arith.constant 3 : index
    %c0_28 = arith.constant 0 : index
    %c0_29 = arith.constant 0 : index
    %34 = vector.load %arg3[%c3, %c0_28, %c0_29] : memref<16x4x128xbf16, #tpu.memory_space<vmem>>, vector<1x4x128xbf16>
    %35 = vector.shape_cast %34 : vector<1x4x128xbf16> to vector<4x128xbf16>
    %cst_30 = arith.constant dense<0.000000e+00> : vector<32x128xf32>
    %36 = tpu.matmul %33, %35, %cst_30 {dimension_numbers = #tpu.dot_dimension_numbers<[1], [0], [0], [1], [0, 0, 1, 1], [], []>} : vector<32x4xbf16>, vector<4x128xbf16>, vector<32x128xf32> -> vector<32x128xf32>
    %37 = arith.addf %28, %36 : vector<32x128xf32>
    %c0_i32_31 = arith.constant 0 : i32
    %38 = arith.addi %0, %c0_i32_31 : i32
    %c0_32 = arith.constant 0 : index
    %c2_33 = arith.constant 2 : index
    %39 = arith.index_cast %38 : i32 to index
    %c0_34 = arith.constant 0 : index
    %c0_35 = arith.constant 0 : index
    %40 = vector.load %arg2[%c0_32, %c2_33, %39, %c0_34, %c0_35] : memref<1x4x9x9x4xbf16, #tpu.memory_space<vmem>>, vector<1x1x4x8x4xbf16>
    %41 = vector.shape_cast %40 : vector<1x1x4x8x4xbf16> to vector<4x8x4xbf16>
    %42 = vector.shape_cast %41 : vector<4x8x4xbf16> to vector<32x4xbf16>
    %c4 = arith.constant 4 : index
    %c0_36 = arith.constant 0 : index
    %c0_37 = arith.constant 0 : index
    %43 = vector.load %arg3[%c4, %c0_36, %c0_37] : memref<16x4x128xbf16, #tpu.memory_space<vmem>>, vector<1x4x128xbf16>
    %44 = vector.shape_cast %43 : vector<1x4x128xbf16> to vector<4x128xbf16>
    %cst_38 = arith.constant dense<0.000000e+00> : vector<32x128xf32>
    %45 = tpu.matmul %42, %44, %cst_38 {dimension_numbers = #tpu.dot_dimension_numbers<[1], [0], [0], [1], [0, 0, 1, 1], [], []>} : vector<32x4xbf16>, vector<4x128xbf16>, vector<32x128xf32> -> vector<32x128xf32>
    %46 = arith.addf %37, %45 : vector<32x128xf32>
    %c0_i32_39 = arith.constant 0 : i32
    %47 = arith.addi %0, %c0_i32_39 : i32
    %c0_40 = arith.constant 0 : index
    %c3_41 = arith.constant 3 : index
    %48 = arith.index_cast %47 : i32 to index
    %c0_42 = arith.constant 0 : index
    %c0_43 = arith.constant 0 : index
    %49 = vector.load %arg2[%c0_40, %c3_41, %48, %c0_42, %c0_43] : memref<1x4x9x9x4xbf16, #tpu.memory_space<vmem>>, vector<1x1x4x8x4xbf16>
    %50 = vector.shape_cast %49 : vector<1x1x4x8x4xbf16> to vector<4x8x4xbf16>
    %51 = vector.shape_cast %50 : vector<4x8x4xbf16> to vector<32x4xbf16>
    %c5 = arith.constant 5 : index
    %c0_44 = arith.constant 0 : index
    %c0_45 = arith.constant 0 : index
    %52 = vector.load %arg3[%c5, %c0_44, %c0_45] : memref<16x4x128xbf16, #tpu.memory_space<vmem>>, vector<1x4x128xbf16>
    %53 = vector.shape_cast %52 : vector<1x4x128xbf16> to vector<4x128xbf16>
    %cst_46 = arith.constant dense<0.000000e+00> : vector<32x128xf32>
    %54 = tpu.matmul %51, %53, %cst_46 {dimension_numbers = #tpu.dot_dimension_numbers<[1], [0], [0], [1], [0, 0, 1, 1], [], []>} : vector<32x4xbf16>, vector<4x128xbf16>, vector<32x128xf32> -> vector<32x128xf32>
    %55 = arith.addf %46, %54 : vector<32x128xf32>
    %c0_i32_47 = arith.constant 0 : i32
    %56 = arith.addi %0, %c0_i32_47 : i32
    %c0_48 = arith.constant 0 : index
    %c2_49 = arith.constant 2 : index
    %57 = arith.index_cast %56 : i32 to index
    %c1_50 = arith.constant 1 : index
    %c0_51 = arith.constant 0 : index
    %58 = vector.load %arg2[%c0_48, %c2_49, %57, %c1_50, %c0_51] : memref<1x4x9x9x4xbf16, #tpu.memory_space<vmem>>, vector<1x1x4x8x4xbf16>
    %59 = vector.shape_cast %58 : vector<1x1x4x8x4xbf16> to vector<4x8x4xbf16>
    %60 = vector.shape_cast %59 : vector<4x8x4xbf16> to vector<32x4xbf16>
    %c6 = arith.constant 6 : index
    %c0_52 = arith.constant 0 : index
    %c0_53 = arith.constant 0 : index
    %61 = vector.load %arg3[%c6, %c0_52, %c0_53] : memref<16x4x128xbf16, #tpu.memory_space<vmem>>, vector<1x4x128xbf16>
    %62 = vector.shape_cast %61 : vector<1x4x128xbf16> to vector<4x128xbf16>
    %cst_54 = arith.constant dense<0.000000e+00> : vector<32x128xf32>
    %63 = tpu.matmul %60, %62, %cst_54 {dimension_numbers = #tpu.dot_dimension_numbers<[1], [0], [0], [1], [0, 0, 1, 1], [], []>} : vector<32x4xbf16>, vector<4x128xbf16>, vector<32x128xf32> -> vector<32x128xf32>
    %64 = arith.addf %55, %63 : vector<32x128xf32>
    %c0_i32_55 = arith.constant 0 : i32
    %65 = arith.addi %0, %c0_i32_55 : i32
    %c0_56 = arith.constant 0 : index
    %c3_57 = arith.constant 3 : index
    %66 = arith.index_cast %65 : i32 to index
    %c1_58 = arith.constant 1 : index
    %c0_59 = arith.constant 0 : index
    %67 = vector.load %arg2[%c0_56, %c3_57, %66, %c1_58, %c0_59] : memref<1x4x9x9x4xbf16, #tpu.memory_space<vmem>>, vector<1x1x4x8x4xbf16>
    %68 = vector.shape_cast %67 : vector<1x1x4x8x4xbf16> to vector<4x8x4xbf16>
    %69 = vector.shape_cast %68 : vector<4x8x4xbf16> to vector<32x4xbf16>
    %c7 = arith.constant 7 : index
    %c0_60 = arith.constant 0 : index
    %c0_61 = arith.constant 0 : index
    %70 = vector.load %arg3[%c7, %c0_60, %c0_61] : memref<16x4x128xbf16, #tpu.memory_space<vmem>>, vector<1x4x128xbf16>
    %71 = vector.shape_cast %70 : vector<1x4x128xbf16> to vector<4x128xbf16>
    %cst_62 = arith.constant dense<0.000000e+00> : vector<32x128xf32>
    %72 = tpu.matmul %69, %71, %cst_62 {dimension_numbers = #tpu.dot_dimension_numbers<[1], [0], [0], [1], [0, 0, 1, 1], [], []>} : vector<32x4xbf16>, vector<4x128xbf16>, vector<32x128xf32> -> vector<32x128xf32>
    %73 = arith.addf %64, %72 : vector<32x128xf32>
    %c1_i32 = arith.constant 1 : i32
    %74 = arith.addi %0, %c1_i32 : i32
    %c0_63 = arith.constant 0 : index
    %c0_64 = arith.constant 0 : index
    %75 = arith.index_cast %74 : i32 to index
    %c0_65 = arith.constant 0 : index
    %c0_66 = arith.constant 0 : index
    %76 = vector.load %arg2[%c0_63, %c0_64, %75, %c0_65, %c0_66] : memref<1x4x9x9x4xbf16, #tpu.memory_space<vmem>>, vector<1x1x4x8x4xbf16>
    %77 = vector.shape_cast %76 : vector<1x1x4x8x4xbf16> to vector<4x8x4xbf16>
    %78 = vector.shape_cast %77 : vector<4x8x4xbf16> to vector<32x4xbf16>
    %c8 = arith.constant 8 : index
    %c0_67 = arith.constant 0 : index
    %c0_68 = arith.constant 0 : index
    %79 = vector.load %arg3[%c8, %c0_67, %c0_68] : memref<16x4x128xbf16, #tpu.memory_space<vmem>>, vector<1x4x128xbf16>
    %80 = vector.shape_cast %79 : vector<1x4x128xbf16> to vector<4x128xbf16>
    %cst_69 = arith.constant dense<0.000000e+00> : vector<32x128xf32>
    %81 = tpu.matmul %78, %80, %cst_69 {dimension_numbers = #tpu.dot_dimension_numbers<[1], [0], [0], [1], [0, 0, 1, 1], [], []>} : vector<32x4xbf16>, vector<4x128xbf16>, vector<32x128xf32> -> vector<32x128xf32>
    %82 = arith.addf %73, %81 : vector<32x128xf32>
    %c1_i32_70 = arith.constant 1 : i32
    %83 = arith.addi %0, %c1_i32_70 : i32
    %c0_71 = arith.constant 0 : index
    %c1_72 = arith.constant 1 : index
    %84 = arith.index_cast %83 : i32 to index
    %c0_73 = arith.constant 0 : index
    %c0_74 = arith.constant 0 : index
    %85 = vector.load %arg2[%c0_71, %c1_72, %84, %c0_73, %c0_74] : memref<1x4x9x9x4xbf16, #tpu.memory_space<vmem>>, vector<1x1x4x8x4xbf16>
    %86 = vector.shape_cast %85 : vector<1x1x4x8x4xbf16> to vector<4x8x4xbf16>
    %87 = vector.shape_cast %86 : vector<4x8x4xbf16> to vector<32x4xbf16>
    %c9 = arith.constant 9 : index
    %c0_75 = arith.constant 0 : index
    %c0_76 = arith.constant 0 : index
    %88 = vector.load %arg3[%c9, %c0_75, %c0_76] : memref<16x4x128xbf16, #tpu.memory_space<vmem>>, vector<1x4x128xbf16>
    %89 = vector.shape_cast %88 : vector<1x4x128xbf16> to vector<4x128xbf16>
    %cst_77 = arith.constant dense<0.000000e+00> : vector<32x128xf32>
    %90 = tpu.matmul %87, %89, %cst_77 {dimension_numbers = #tpu.dot_dimension_numbers<[1], [0], [0], [1], [0, 0, 1, 1], [], []>} : vector<32x4xbf16>, vector<4x128xbf16>, vector<32x128xf32> -> vector<32x128xf32>
    %91 = arith.addf %82, %90 : vector<32x128xf32>
    %c1_i32_78 = arith.constant 1 : i32
    %92 = arith.addi %0, %c1_i32_78 : i32
    %c0_79 = arith.constant 0 : index
    %c0_80 = arith.constant 0 : index
    %93 = arith.index_cast %92 : i32 to index
    %c1_81 = arith.constant 1 : index
    %c0_82 = arith.constant 0 : index
    %94 = vector.load %arg2[%c0_79, %c0_80, %93, %c1_81, %c0_82] : memref<1x4x9x9x4xbf16, #tpu.memory_space<vmem>>, vector<1x1x4x8x4xbf16>
    %95 = vector.shape_cast %94 : vector<1x1x4x8x4xbf16> to vector<4x8x4xbf16>
    %96 = vector.shape_cast %95 : vector<4x8x4xbf16> to vector<32x4xbf16>
    %c10 = arith.constant 10 : index
    %c0_83 = arith.constant 0 : index
    %c0_84 = arith.constant 0 : index
    %97 = vector.load %arg3[%c10, %c0_83, %c0_84] : memref<16x4x128xbf16, #tpu.memory_space<vmem>>, vector<1x4x128xbf16>
    %98 = vector.shape_cast %97 : vector<1x4x128xbf16> to vector<4x128xbf16>
    %cst_85 = arith.constant dense<0.000000e+00> : vector<32x128xf32>
    %99 = tpu.matmul %96, %98, %cst_85 {dimension_numbers = #tpu.dot_dimension_numbers<[1], [0], [0], [1], [0, 0, 1, 1], [], []>} : vector<32x4xbf16>, vector<4x128xbf16>, vector<32x128xf32> -> vector<32x128xf32>
    %100 = arith.addf %91, %99 : vector<32x128xf32>
    %c1_i32_86 = arith.constant 1 : i32
    %101 = arith.addi %0, %c1_i32_86 : i32
    %c0_87 = arith.constant 0 : index
    %c1_88 = arith.constant 1 : index
    %102 = arith.index_cast %101 : i32 to index
    %c1_89 = arith.constant 1 : index
    %c0_90 = arith.constant 0 : index
    %103 = vector.load %arg2[%c0_87, %c1_88, %102, %c1_89, %c0_90] : memref<1x4x9x9x4xbf16, #tpu.memory_space<vmem>>, vector<1x1x4x8x4xbf16>
    %104 = vector.shape_cast %103 : vector<1x1x4x8x4xbf16> to vector<4x8x4xbf16>
    %105 = vector.shape_cast %104 : vector<4x8x4xbf16> to vector<32x4xbf16>
    %c11 = arith.constant 11 : index
    %c0_91 = arith.constant 0 : index
    %c0_92 = arith.constant 0 : index
    %106 = vector.load %arg3[%c11, %c0_91, %c0_92] : memref<16x4x128xbf16, #tpu.memory_space<vmem>>, vector<1x4x128xbf16>
    %107 = vector.shape_cast %106 : vector<1x4x128xbf16> to vector<4x128xbf16>
    %cst_93 = arith.constant dense<0.000000e+00> : vector<32x128xf32>
    %108 = tpu.matmul %105, %107, %cst_93 {dimension_numbers = #tpu.dot_dimension_numbers<[1], [0], [0], [1], [0, 0, 1, 1], [], []>} : vector<32x4xbf16>, vector<4x128xbf16>, vector<32x128xf32> -> vector<32x128xf32>
    %109 = arith.addf %100, %108 : vector<32x128xf32>
    %c1_i32_94 = arith.constant 1 : i32
    %110 = arith.addi %0, %c1_i32_94 : i32
    %c0_95 = arith.constant 0 : index
    %c2_96 = arith.constant 2 : index
    %111 = arith.index_cast %110 : i32 to index
    %c0_97 = arith.constant 0 : index
    %c0_98 = arith.constant 0 : index
    %112 = vector.load %arg2[%c0_95, %c2_96, %111, %c0_97, %c0_98] : memref<1x4x9x9x4xbf16, #tpu.memory_space<vmem>>, vector<1x1x4x8x4xbf16>
    %113 = vector.shape_cast %112 : vector<1x1x4x8x4xbf16> to vector<4x8x4xbf16>
    %114 = vector.shape_cast %113 : vector<4x8x4xbf16> to vector<32x4xbf16>
    %c12 = arith.constant 12 : index
    %c0_99 = arith.constant 0 : index
    %c0_100 = arith.constant 0 : index
    %115 = vector.load %arg3[%c12, %c0_99, %c0_100] : memref<16x4x128xbf16, #tpu.memory_space<vmem>>, vector<1x4x128xbf16>
    %116 = vector.shape_cast %115 : vector<1x4x128xbf16> to vector<4x128xbf16>
    %cst_101 = arith.constant dense<0.000000e+00> : vector<32x128xf32>
    %117 = tpu.matmul %114, %116, %cst_101 {dimension_numbers = #tpu.dot_dimension_numbers<[1], [0], [0], [1], [0, 0, 1, 1], [], []>} : vector<32x4xbf16>, vector<4x128xbf16>, vector<32x128xf32> -> vector<32x128xf32>
    %118 = arith.addf %109, %117 : vector<32x128xf32>
    %c1_i32_102 = arith.constant 1 : i32
    %119 = arith.addi %0, %c1_i32_102 : i32
    %c0_103 = arith.constant 0 : index
    %c3_104 = arith.constant 3 : index
    %120 = arith.index_cast %119 : i32 to index
    %c0_105 = arith.constant 0 : index
    %c0_106 = arith.constant 0 : index
    %121 = vector.load %arg2[%c0_103, %c3_104, %120, %c0_105, %c0_106] : memref<1x4x9x9x4xbf16, #tpu.memory_space<vmem>>, vector<1x1x4x8x4xbf16>
    %122 = vector.shape_cast %121 : vector<1x1x4x8x4xbf16> to vector<4x8x4xbf16>
    %123 = vector.shape_cast %122 : vector<4x8x4xbf16> to vector<32x4xbf16>
    %c13 = arith.constant 13 : index
    %c0_107 = arith.constant 0 : index
    %c0_108 = arith.constant 0 : index
    %124 = vector.load %arg3[%c13, %c0_107, %c0_108] : memref<16x4x128xbf16, #tpu.memory_space<vmem>>, vector<1x4x128xbf16>
    %125 = vector.shape_cast %124 : vector<1x4x128xbf16> to vector<4x128xbf16>
    %cst_109 = arith.constant dense<0.000000e+00> : vector<32x128xf32>
    %126 = tpu.matmul %123, %125, %cst_109 {dimension_numbers = #tpu.dot_dimension_numbers<[1], [0], [0], [1], [0, 0, 1, 1], [], []>} : vector<32x4xbf16>, vector<4x128xbf16>, vector<32x128xf32> -> vector<32x128xf32>
    %127 = arith.addf %118, %126 : vector<32x128xf32>
    %c1_i32_110 = arith.constant 1 : i32
    %128 = arith.addi %0, %c1_i32_110 : i32
    %c0_111 = arith.constant 0 : index
    %c2_112 = arith.constant 2 : index
    %129 = arith.index_cast %128 : i32 to index
    %c1_113 = arith.constant 1 : index
    %c0_114 = arith.constant 0 : index
    %130 = vector.load %arg2[%c0_111, %c2_112, %129, %c1_113, %c0_114] : memref<1x4x9x9x4xbf16, #tpu.memory_space<vmem>>, vector<1x1x4x8x4xbf16>
    %131 = vector.shape_cast %130 : vector<1x1x4x8x4xbf16> to vector<4x8x4xbf16>
    %132 = vector.shape_cast %131 : vector<4x8x4xbf16> to vector<32x4xbf16>
    %c14 = arith.constant 14 : index
    %c0_115 = arith.constant 0 : index
    %c0_116 = arith.constant 0 : index
    %133 = vector.load %arg3[%c14, %c0_115, %c0_116] : memref<16x4x128xbf16, #tpu.memory_space<vmem>>, vector<1x4x128xbf16>
    %134 = vector.shape_cast %133 : vector<1x4x128xbf16> to vector<4x128xbf16>
    %cst_117 = arith.constant dense<0.000000e+00> : vector<32x128xf32>
    %135 = tpu.matmul %132, %134, %cst_117 {dimension_numbers = #tpu.dot_dimension_numbers<[1], [0], [0], [1], [0, 0, 1, 1], [], []>} : vector<32x4xbf16>, vector<4x128xbf16>, vector<32x128xf32> -> vector<32x128xf32>
    %136 = arith.addf %127, %135 : vector<32x128xf32>
    %c1_i32_118 = arith.constant 1 : i32
    %137 = arith.addi %0, %c1_i32_118 : i32
    %c0_119 = arith.constant 0 : index
    %c3_120 = arith.constant 3 : index
    %138 = arith.index_cast %137 : i32 to index
    %c1_121 = arith.constant 1 : index
    %c0_122 = arith.constant 0 : index
    %139 = vector.load %arg2[%c0_119, %c3_120, %138, %c1_121, %c0_122] : memref<1x4x9x9x4xbf16, #tpu.memory_space<vmem>>, vector<1x1x4x8x4xbf16>
    %140 = vector.shape_cast %139 : vector<1x1x4x8x4xbf16> to vector<4x8x4xbf16>
    %141 = vector.shape_cast %140 : vector<4x8x4xbf16> to vector<32x4xbf16>
    %c15 = arith.constant 15 : index
    %c0_123 = arith.constant 0 : index
    %c0_124 = arith.constant 0 : index
    %142 = vector.load %arg3[%c15, %c0_123, %c0_124] : memref<16x4x128xbf16, #tpu.memory_space<vmem>>, vector<1x4x128xbf16>
    %143 = vector.shape_cast %142 : vector<1x4x128xbf16> to vector<4x128xbf16>
    %cst_125 = arith.constant dense<0.000000e+00> : vector<32x128xf32>
    %144 = tpu.matmul %141, %143, %cst_125 {dimension_numbers = #tpu.dot_dimension_numbers<[1], [0], [0], [1], [0, 0, 1, 1], [], []>} : vector<32x4xbf16>, vector<4x128xbf16>, vector<32x128xf32> -> vector<32x128xf32>
    %145 = arith.addf %136, %144 : vector<32x128xf32>
    %146 = arith.truncf %145 : vector<32x128xf32> to vector<32x128xbf16>
    %147 = vector.shape_cast %146 : vector<32x128xbf16> to vector<1x32x128xbf16>
    %c0_126 = arith.constant 0 : index
    %c0_127 = arith.constant 0 : index
    %c0_128 = arith.constant 0 : index
    %148 = vector.load %arg4[%c0_126, %c0_127, %c0_128] : memref<1x32x128xbf16, #tpu.memory_space<vmem>>, vector<1x32x128xbf16>
    tpu.vector_store %arg4[%c0_126, %c0_127, %c0_128], %147 {strides = array<i32>} : memref<1x32x128xbf16, #tpu.memory_space<vmem>>, vector<1x32x128xbf16>,
    %cst_129 = arith.constant dense<0.000000e+00> : vector<128xf32>
    %149 = vector.multi_reduction <add>, %145, %cst_129 [0] : vector<32x128xf32> to vector<128xf32>
    %150 = vector.shape_cast %149 : vector<128xf32> to vector<1x1x1x128xf32>
    %151 = arith.mulf %145, %145 : vector<32x128xf32>
    %cst_130 = arith.constant dense<0.000000e+00> : vector<128xf32>
    %152 = vector.multi_reduction <add>, %151, %cst_130 [0] : vector<32x128xf32> to vector<128xf32>
    %153 = vector.shape_cast %152 : vector<128xf32> to vector<1x1x1x128xf32>
    %154 = vector.shape_cast %150 : vector<1x1x1x128xf32> to vector<1x1x1x128xf32>
    %155 = vector.broadcast %154 : vector<1x1x1x128xf32> to vector<1x1x8x128xf32>
    %c0_131 = arith.constant 0 : index
    %c0_132 = arith.constant 0 : index
    %c0_133 = arith.constant 0 : index
    %c0_134 = arith.constant 0 : index
    %156 = vector.load %arg5[%c0_131, %c0_132, %c0_133, %c0_134] : memref<1x1x8x128xf32, #tpu.memory_space<vmem>>, vector<1x1x8x128xf32>
    tpu.vector_store %arg5[%c0_131, %c0_132, %c0_133, %c0_134], %155 {strides = array<i32>} : memref<1x1x8x128xf32, #tpu.memory_space<vmem>>, vector<1x1x8x128xf32>,
    %157 = vector.shape_cast %153 : vector<1x1x1x128xf32> to vector<1x1x1x128xf32>
    %158 = vector.broadcast %157 : vector<1x1x1x128xf32> to vector<1x1x8x128xf32>
    %c0_135 = arith.constant 0 : index
    %c0_136 = arith.constant 0 : index
    %c0_137 = arith.constant 0 : index
    %c0_138 = arith.constant 0 : index
    %159 = vector.load %arg6[%c0_135, %c0_136, %c0_137, %c0_138] : memref<1x1x8x128xf32, #tpu.memory_space<vmem>>, vector<1x1x8x128xf32>
    tpu.vector_store %arg6[%c0_135, %c0_136, %c0_137, %c0_138], %158 {strides = array<i32>} : memref<1x1x8x128xf32, #tpu.memory_space<vmem>>, vector<1x1x8x128xf32>,
    return
  }
  func.func @transform_0(%arg0: i32, %arg1: i32) -> (i32, i32, i32, i32, i32) {
    %c0_i32 = arith.constant 0 : i32
    %c0_i32_0 = arith.constant 0 : i32
    %c0_i32_1 = arith.constant 0 : i32
    %c0_i32_2 = arith.constant 0 : i32
    %c0_i32_3 = arith.constant 0 : i32
    return %arg0, %c0_i32, %c0_i32_0, %c0_i32_1, %c0_i32_2 : i32, i32, i32, i32, i32
  }
  func.func @transform_1(%arg0: i32, %arg1: i32) -> (i32, i32, i32) {
    %c0_i32 = arith.constant 0 : i32
    %c0_i32_0 = arith.constant 0 : i32
    %c0_i32_1 = arith.constant 0 : i32
    %c0_i32_2 = arith.constant 0 : i32
    return %c0_i32, %c0_i32_0, %c0_i32_1 : i32, i32, i32
  }
  func.func @transform_2(%arg0: i32, %arg1: i32) -> (i32, i32, i32) {
    %c2_i32 = arith.constant 2 : i32
    %0 = arith.muli %arg0, %c2_i32 : i32
    %1 = arith.addi %0, %arg1 : i32
    %c0_i32 = arith.constant 0 : i32
    %c0_i32_0 = arith.constant 0 : i32
    %c0_i32_1 = arith.constant 0 : i32
    return %1, %c0_i32, %c0_i32_0 : i32, i32, i32
  }
  func.func @transform_3(%arg0: i32, %arg1: i32) -> (i32, i32, i32, i32) {
    %c0_i32 = arith.constant 0 : i32
    %c0_i32_0 = arith.constant 0 : i32
    %c0_i32_1 = arith.constant 0 : i32
    return %arg0, %arg1, %c0_i32, %c0_i32_0 : i32, i32, i32, i32
  }
  func.func @transform_4(%arg0: i32, %arg1: i32) -> (i32, i32, i32, i32) {
    %c0_i32 = arith.constant 0 : i32
    %c0_i32_0 = arith.constant 0 : i32
    %c0_i32_1 = arith.constant 0 : i32
    return %arg0, %arg1, %c0_i32, %c0_i32_0 : i32, i32, i32, i32
  }
}

module attributes {stable_mosaic.version = 11 : i64} {
  func.func @_bn_lrelu_kernel(%arg0: i32, %arg1: memref<4x32x128xbf16, #tpu.memory_space<vmem>>, %arg2: memref<1x128xf32, #tpu.memory_space<vmem>>, %arg3: memref<1x128xf32, #tpu.memory_space<vmem>>, %arg4: memref<4x32x128xbf16, #tpu.memory_space<vmem>>) attributes {dimension_semantics = [#tpu.dimension_semantics<parallel>], iteration_bounds = array<i64: 1>, scalar_prefetch = 0 : i64, scratch_operands = 0 : i64, tpu.core_type = #tpu.core_type<tc>, window_params = [{transform_indices = @transform_0, window_bounds = array<i64: 4, 32, 128>}, {pipeline_mode = #tpu.pipeline_mode<synchronous>, transform_indices = @transform_1, window_bounds = array<i64: 1, 128>}, {pipeline_mode = #tpu.pipeline_mode<synchronous>, transform_indices = @transform_2, window_bounds = array<i64: 1, 128>}, {transform_indices = @transform_3, window_bounds = array<i64: 4, 32, 128>}]} {
    %c0 = arith.constant 0 : index
    %c0_0 = arith.constant 0 : index
    %c0_1 = arith.constant 0 : index
    %0 = vector.load %arg1[%c0, %c0_0, %c0_1] : memref<4x32x128xbf16, #tpu.memory_space<vmem>>, vector<4x32x128xbf16>
    %1 = arith.extf %0 : vector<4x32x128xbf16> to vector<4x32x128xf32>
    %c0_2 = arith.constant 0 : index
    %c0_3 = arith.constant 0 : index
    %2 = vector.load %arg2[%c0_2, %c0_3] : memref<1x128xf32, #tpu.memory_space<vmem>>, vector<1x128xf32>
    %3 = vector.shape_cast %2 : vector<1x128xf32> to vector<1x1x128xf32>
    %4 = vector.broadcast %3 : vector<1x1x128xf32> to vector<4x32x128xf32>
    %5 = arith.mulf %1, %4 : vector<4x32x128xf32>
    %c0_4 = arith.constant 0 : index
    %c0_5 = arith.constant 0 : index
    %6 = vector.load %arg3[%c0_4, %c0_5] : memref<1x128xf32, #tpu.memory_space<vmem>>, vector<1x128xf32>
    %7 = vector.shape_cast %6 : vector<1x128xf32> to vector<1x1x128xf32>
    %8 = vector.broadcast %7 : vector<1x1x128xf32> to vector<4x32x128xf32>
    %9 = arith.addf %5, %8 : vector<4x32x128xf32>
    %cst = arith.constant 0.000000e+00 : f32
    %10 = vector.broadcast %cst : f32 to vector<4x32x128xf32>
    %11 = arith.cmpf oge, %9, %10 : vector<4x32x128xf32>
    %cst_6 = arith.constant 2.000000e-01 : f32
    %12 = vector.broadcast %cst_6 : f32 to vector<4x32x128xf32>
    %13 = arith.mulf %12, %9 : vector<4x32x128xf32>
    %14 = arith.select %11, %9, %13 : vector<4x32x128xi1>, vector<4x32x128xf32>
    %15 = arith.truncf %14 : vector<4x32x128xf32> to vector<4x32x128xbf16>
    %c0_7 = arith.constant 0 : index
    %c0_8 = arith.constant 0 : index
    %c0_9 = arith.constant 0 : index
    %16 = vector.load %arg4[%c0_7, %c0_8, %c0_9] : memref<4x32x128xbf16, #tpu.memory_space<vmem>>, vector<4x32x128xbf16>
    tpu.vector_store %arg4[%c0_7, %c0_8, %c0_9], %15 {strides = array<i32>} : memref<4x32x128xbf16, #tpu.memory_space<vmem>>, vector<4x32x128xbf16>,
    return
  }
  func.func @transform_0(%arg0: i32) -> (i32, i32, i32) {
    %c0_i32 = arith.constant 0 : i32
    %c0_i32_0 = arith.constant 0 : i32
    %c0_i32_1 = arith.constant 0 : i32
    return %arg0, %c0_i32, %c0_i32_0 : i32, i32, i32
  }
  func.func @transform_1(%arg0: i32) -> (i32, i32) {
    %c0_i32 = arith.constant 0 : i32
    %c0_i32_0 = arith.constant 0 : i32
    %c0_i32_1 = arith.constant 0 : i32
    return %c0_i32, %c0_i32_0 : i32, i32
  }
  func.func @transform_2(%arg0: i32) -> (i32, i32) {
    %c0_i32 = arith.constant 0 : i32
    %c0_i32_0 = arith.constant 0 : i32
    %c0_i32_1 = arith.constant 0 : i32
    return %c0_i32, %c0_i32_0 : i32, i32
  }
  func.func @transform_3(%arg0: i32) -> (i32, i32, i32) {
    %c0_i32 = arith.constant 0 : i32
    %c0_i32_0 = arith.constant 0 : i32
    %c0_i32_1 = arith.constant 0 : i32
    return %arg0, %c0_i32, %c0_i32_0 : i32, i32, i32
  }
}

</mosaic_0001>

<llo_original>
// kernel: encode_layer.3
$region0: #{encode_layer.3}
  #allocation0 [shape = 'u32[]', space=smem, size = 0x4, offset = 0x4, fixed_abs, tag = 'smem constant byte address 0x4 - core index']
  #allocation1 [shape = 'u32[144,128]{1,0:T(1,128)}', space=vmem, size = 0x12000, scoped, tag = 'internal scratch']
  %s0 = inlined_call_operand.vmem [shape: bf16[4,32,128], index: 0, kind: input, shape index: {}, may-alias: {0,3}]
  %s1 = inlined_call_operand.vmem [shape: f32[1,128], index: 1, kind: input, shape index: {}]
  %s2 = inlined_call_operand.vmem [shape: f32[1,128], index: 2, kind: input, shape index: {}]
  %s3 = inlined_call_operand.vmem [shape: bf16[4,32,128], index: 3, kind: output, shape index: {}, may-alias: {0,3}]
  %s4 = sld [smem:[#allocation0]]
  $region22: #{encode_layer.3} parent=0
    _
  %s6 = ssub.s32 1, %s4
  %s7 = scalar_select 0, %s6, %s4
  // Predicated region
  $region2: #{encode_layer.3} parent=0 // pred_check
    _
  $region3: #{encode_layer.3} parent=0 // pred_check_branch
    %9 = sbr.rel (0) target = $region5
  $region4: #{encode_layer.3} parent=0 // pred_region
    _
  $region5: #{encode_layer.3} parent=0 // pred_fallthru
    _
  // Predicated region
  $region6: #{encode_layer.3} parent=0 // pred_check
    _
  $region7: #{encode_layer.3} parent=0 // pred_check_branch
    %11 = sbr.rel (0) target = $region9
  $region8: #{encode_layer.3} parent=0 // pred_region
    _
  $region9: #{encode_layer.3} parent=0 // pred_fallthru
    _
  // Predicated region
  $region10: #{encode_layer.3} parent=0 // pred_check
    _
  $region11: #{encode_layer.3} parent=0 // pred_check_branch
    %13 = sbr.rel (0) target = $region13
  $region12: #{encode_layer.3} parent=0 // pred_region
    _
  $region13: #{encode_layer.3} parent=0 // pred_fallthru
    _
  %v14 = vld [vmem:[%s0] sm:$0xf]
  %v15 = vld [vmem:[%s0 + $0x4] sm:$0xf]
  %v16 = vld [vmem:[%s0 + $0x8] sm:$0xf]
  %v17 = vld [vmem:[%s0 + $0xc] sm:$0xf]
  %v18 = vld [vmem:[%s0 + $0x10] sm:$0xf]
  %v19 = vld [vmem:[%s0 + $0x14] sm:$0xf]
  %v20 = vld [vmem:[%s0 + $0x18] sm:$0xf]
  %v21 = vld [vmem:[%s0 + $0x1c] sm:$0xf]
  %v22 = vld [vmem:[%s0 + $0x20] sm:$0xf]
  %v23 = vld [vmem:[%s0 + $0x24] sm:$0xf]
  %v24 = vld [vmem:[%s0 + $0x28] sm:$0xf]
  %v25 = vld [vmem:[%s0 + $0x2c] sm:$0xf]
  %v26 = vld [vmem:[%s0 + $0x30] sm:$0xf]
  %v27 = vld [vmem:[%s0 + $0x34] sm:$0xf]
  %v28 = vld [vmem:[%s0 + $0x38] sm:$0xf]
  %v29 = vld [vmem:[%s0 + $0x3c] sm:$0xf]
  %v30 = vunpack.c.l.bf16 %v14
  %v31 = vunpack.c.l.bf16 %v15
  %v32 = vunpack.c.l.bf16 %v16
  %v33 = vunpack.c.l.bf16 %v17
  %v34 = vunpack.c.l.bf16 %v18
  %v35 = vunpack.c.l.bf16 %v19
  %v36 = vunpack.c.l.bf16 %v20
  %v37 = vunpack.c.l.bf16 %v21
  %v38 = vunpack.c.l.bf16 %v22
  %v39 = vunpack.c.l.bf16 %v23
  %v40 = vunpack.c.l.bf16 %v24
  %v41 = vunpack.c.l.bf16 %v25
  %v42 = vunpack.c.l.bf16 %v26
  %v43 = vunpack.c.l.bf16 %v27
  %v44 = vunpack.c.l.bf16 %v28
  %v45 = vunpack.c.l.bf16 %v29
  %v46 = vld [vmem:[%s1] sm:$0x1]
  %v48 = vlaneseq
  %v49 = vshrl.u32 %v48, 7
  %v50 = vsub.s32 0, %v49
  %v51 = vrot.slane %v46, %v50
  %v53 = vmul.f32 %v30, %v51
  %v54 = vmul.f32 %v31, %v51
  %v55 = vmul.f32 %v32, %v51
  %v56 = vmul.f32 %v33, %v51
  %v57 = vmul.f32 %v34, %v51
  %v58 = vmul.f32 %v35, %v51
  %v59 = vmul.f32 %v36, %v51
  %v60 = vmul.f32 %v37, %v51
  %v61 = vmul.f32 %v38, %v51
  %v62 = vmul.f32 %v39, %v51
  %v63 = vmul.f32 %v40, %v51
  %v64 = vmul.f32 %v41, %v51
  %v65 = vmul.f32 %v42, %v51
  %v66 = vmul.f32 %v43, %v51
  %v67 = vmul.f32 %v44, %v51
  %v68 = vmul.f32 %v45, %v51
  %v69 = vld [vmem:[%s2] sm:$0x1]
  %v71 = vlaneseq
  %v72 = vshrl.u32 %v71, 7
  %v73 = vsub.s32 0, %v72
  %v74 = vrot.slane %v69, %v73
  %v76 = vadd.f32 %v53, %v74
  %v77 = vadd.f32 %v54, %v74
  %v78 = vadd.f32 %v55, %v74
  %v79 = vadd.f32 %v56, %v74
  %v80 = vadd.f32 %v57, %v74
  %v81 = vadd.f32 %v58, %v74
  %v82 = vadd.f32 %v59, %v74
  %v83 = vadd.f32 %v60, %v74
  %v84 = vadd.f32 %v61, %v74
  %v85 = vadd.f32 %v62, %v74
  %v86 = vadd.f32 %v63, %v74
  %v87 = vadd.f32 %v64, %v74
  %v88 = vadd.f32 %v65, %v74
  %v89 = vadd.f32 %v66, %v74
  %v90 = vadd.f32 %v67, %v74
  %v91 = vadd.f32 %v68, %v74
  %vm92 = vcmp.ge.f32.partialorder %v76, 0.0
  %vm93 = vcmp.ge.f32.partialorder %v77, 0.0
  %vm94 = vcmp.ge.f32.partialorder %v78, 0.0
  %vm95 = vcmp.ge.f32.partialorder %v79, 0.0
  %vm96 = vcmp.ge.f32.partialorder %v80, 0.0
  %vm97 = vcmp.ge.f32.partialorder %v81, 0.0
  %vm98 = vcmp.ge.f32.partialorder %v82, 0.0
  %vm99 = vcmp.ge.f32.partialorder %v83, 0.0
  %vm100 = vcmp.ge.f32.partialorder %v84, 0.0
  %vm101 = vcmp.ge.f32.partialorder %v85, 0.0
  %vm102 = vcmp.ge.f32.partialorder %v86, 0.0
  %vm103 = vcmp.ge.f32.partialorder %v87, 0.0
  %vm104 = vcmp.ge.f32.partialorder %v88, 0.0
  %vm105 = vcmp.ge.f32.partialorder %v89, 0.0
  %vm106 = vcmp.ge.f32.partialorder %v90, 0.0
  %vm107 = vcmp.ge.f32.partialorder %v91, 0.0
  %v108 = vmul.f32 %v76, 0.2
  %v109 = vmul.f32 %v77, 0.2
  %v110 = vmul.f32 %v78, 0.2
  %v111 = vmul.f32 %v79, 0.2
  %v112 = vmul.f32 %v80, 0.2
  %v113 = vmul.f32 %v81, 0.2
  %v114 = vmul.f32 %v82, 0.2
  %v115 = vmul.f32 %v83, 0.2
  %v116 = vmul.f32 %v84, 0.2
  %v117 = vmul.f32 %v85, 0.2
  %v118 = vmul.f32 %v86, 0.2
  %v119 = vmul.f32 %v87, 0.2
  %v120 = vmul.f32 %v88, 0.2
  %v121 = vmul.f32 %v89, 0.2
  %v122 = vmul.f32 %v90, 0.2
  %v123 = vmul.f32 %v91, 0.2
  %v124 = vsel %vm92, %v76, %v108
  %v125 = vsel %vm93, %v77, %v109
  %v126 = vsel %vm94, %v78, %v110
  %v127 = vsel %vm95, %v79, %v111
  %v128 = vsel %vm96, %v80, %v112
  %v129 = vsel %vm97, %v81, %v113
  %v130 = vsel %vm98, %v82, %v114
  %v131 = vsel %vm99, %v83, %v115
  %v132 = vsel %vm100, %v84, %v116
  %v133 = vsel %vm101, %v85, %v117
  %v134 = vsel %vm102, %v86, %v118
  %v135 = vsel %vm103, %v87, %v119
  %v136 = vsel %vm104, %v88, %v120
  %v137 = vsel %vm105, %v89, %v121
  %v138 = vsel %vm106, %v90, %v122
  %v139 = vsel %vm107, %v91, %v123
  %v140 = vpack.c.bf16 %v125, %v124
  %v141 = vpack.c.bf16 %v127, %v126
  %v142 = vpack.c.bf16 %v129, %v128
  %v143 = vpack.c.bf16 %v131, %v130
  %v144 = vpack.c.bf16 %v133, %v132
  %v145 = vpack.c.bf16 %v135, %v134
  %v146 = vpack.c.bf16 %v137, %v136
  %v147 = vpack.c.bf16 %v139, %v138
  %v156 = vunpack.c.l.b16 %v140
  %v157 = vunpack.c.h.b16 %v140
  %v158 = vunpack.c.l.b16 %v141
  %v159 = vunpack.c.h.b16 %v141
  %v160 = vunpack.c.l.b16 %v142
  %v161 = vunpack.c.h.b16 %v142
  %v162 = vunpack.c.l.b16 %v143
  %v163 = vunpack.c.h.b16 %v143
  %v164 = vunpack.c.l.b16 %v144
  %v165 = vunpack.c.h.b16 %v144
  %v166 = vunpack.c.l.b16 %v145
  %v167 = vunpack.c.h.b16 %v145
  %v168 = vunpack.c.l.b16 %v146
  %v169 = vunpack.c.h.b16 %v146
  %v170 = vunpack.c.l.b16 %v147
  %v171 = vunpack.c.h.b16 %v147
  %v172 = vpack.c.b16 %v156, %v156
  %v173 = vpack.c.b16 %v157, %v157
  %v174 = vpack.c.b16 %v158, %v158
  %v175 = vpack.c.b16 %v159, %v159
  %v176 = vpack.c.b16 %v160, %v160
  %v177 = vpack.c.b16 %v161, %v161
  %v178 = vpack.c.b16 %v162, %v162
  %v179 = vpack.c.b16 %v163, %v163
  %v180 = vpack.c.b16 %v164, %v164
  %v181 = vpack.c.b16 %v165, %v165
  %v182 = vpack.c.b16 %v166, %v166
  %v183 = vpack.c.b16 %v167, %v167
  %v184 = vpack.c.b16 %v168, %v168
  %v185 = vpack.c.b16 %v169, %v169
  %v186 = vpack.c.b16 %v170, %v170
  %v187 = vpack.c.b16 %v171, %v171
  %204 = vst [vmem:[%s3] sm:$0xf] %v172
  %205 = vst [vmem:[%s3 + $0x4] sm:$0xf] %v173
  %206 = vst [vmem:[%s3 + $0x8] sm:$0xf] %v174
  %207 = vst [vmem:[%s3 + $0xc] sm:$0xf] %v175
  %208 = vst [vmem:[%s3 + $0x10] sm:$0xf] %v176
  %209 = vst [vmem:[%s3 + $0x14] sm:$0xf] %v177
  %210 = vst [vmem:[%s3 + $0x18] sm:$0xf] %v178
  %211 = vst [vmem:[%s3 + $0x1c] sm:$0xf] %v179
  %212 = vst [vmem:[%s3 + $0x20] sm:$0xf] %v180
  %213 = vst [vmem:[%s3 + $0x24] sm:$0xf] %v181
  %214 = vst [vmem:[%s3 + $0x28] sm:$0xf] %v182
  %215 = vst [vmem:[%s3 + $0x2c] sm:$0xf] %v183
  %216 = vst [vmem:[%s3 + $0x30] sm:$0xf] %v184
  %217 = vst [vmem:[%s3 + $0x34] sm:$0xf] %v185
  %218 = vst [vmem:[%s3 + $0x38] sm:$0xf] %v186
  %219 = vst [vmem:[%s3 + $0x3c] sm:$0xf] %v187
  // Predicated region
  $region14: #{encode_layer.3} parent=0 // pred_check
    _
  $region15: #{encode_layer.3} parent=0 // pred_check_branch
    %221 = sbr.rel (0) target = $region17
  $region16: #{encode_layer.3} parent=0 // pred_region
    _
  $region17: #{encode_layer.3} parent=0 // pred_fallthru
    _
  // Predicated region
  $region18: #{encode_layer.3} parent=0 // pred_check
    _
  $region19: #{encode_layer.3} parent=0 // pred_check_branch
    %223 = sbr.rel (0) target = $region21
  $region20: #{encode_layer.3} parent=0 // pred_region
    _
  $region21: #{encode_layer.3} parent=0 // pred_fallthru
    _

// kernel: encode_layer.2
$region0: #{encode_layer.2}
  #allocation0 [shape = 'u32[]', space=smem, size = 0x4, offset = 0x4, fixed_abs, tag = 'smem constant byte address 0x4 - core index']
  #allocation1 [shape = 'u32[144,128]{1,0:T(1,128)}', space=vmem, size = 0x12000, scoped, tag = 'internal scratch']
  %s0 = inlined_call_operand.vmem [shape: bf16[2,4,9,9,4], index: 0, kind: input, shape index: {}]
  %s1 = inlined_call_operand.vmem [shape: bf16[16,4,128], index: 1, kind: input, shape index: {}]
  %s2 = inlined_call_operand.vmem [shape: bf16[4,32,128], index: 2, kind: output, shape index: {0}]
  %s3 = inlined_call_operand.vmem [shape: f32[2,2,8,128], index: 3, kind: output, shape index: {1}]
  %s4 = inlined_call_operand.vmem [shape: f32[2,2,8,128], index: 4, kind: output, shape index: {2}]
  %5 = xla_tuple %s2, %s3, %s4
  %s6 = sld [smem:[#allocation0]]
  $region57: #{encode_layer.2} parent=0
    _
  %s8 = ssub.s32 1, %s6
  %s9 = scalar_select 0, %s8, %s6
  loop: start=0, step=1, limit=6
  $region2: #{encode_layer.2} parent=0 // loop_pre_header
    _
  $region3: #{encode_layer.2} parent=0 // loop_header
    %s11 = sphi 0, %s15
    %p12 = scmp.ge.s32.totalorder %s11, 6
    %s18 = sphi 0, %s30
    %s19 = sphi 0, %s26
    %s20 = sphi 0, %s18
    %s21 = sphi 0, %s19
    %s22 = sphi 0, %s20
    %s23 = sphi 0, %s21
    %s33 = sphi 0, %s35
    %s36 = sphi 0, %s33
    %s37 = sphi 0, %s36
    %s53 = sphi 0, %s37
    %s57 = sphi 0, %s57
    %s59 = sphi 0, %s57
    %s60 = sphi 0, %s59
    %s74 = sphi 0, %s60
    %s84 = sphi 0, %s86
    %s87 = sphi 0, %s84
    %s88 = sphi 0, %s87
    %s104 = sphi 0, %s88
    %s112 = sphi 0, %s114
    %s115 = sphi 0, %s112
    %s116 = sphi 0, %s115
    %s132 = sphi 0, %s116
    %s140 = sphi 0, %s142
    %s143 = sphi 0, %s140
    %s144 = sphi 0, %s143
    %s160 = sphi 0, %s144
  $region4: #{encode_layer.2} parent=0 // loop_header_branch
    %14 = sbr.rel (%p12) target = $region8
  $region5: #{encode_layer.2} parent=0 // loop_body
    %s16 = ssub.s32 %s11, 1
    %s17 = ssub.s32 %s11, 2
    %s24 = sadd.s32 1, %s19
    %p25 = scmp.ge.s32.totalorder %s24, 2
    %s26 = scalar_select %p25, 0, %s24
    %s27 = sadd.s32 1, %s18
    %s28 = scalar_select %p25, %s27, %s18
    %p29 = scmp.ge.s32.totalorder %s28, 2
    %s30 = scalar_select %p29, 0, %s28
    %s31 = ssub.s32 %s18, %s30
    %p32 = scmp.eq.s32.totalorder %s31, 0
    %s34 = sadd.s32 %s33, 1
    %s35 = scalar_select %p32, %s33, %s34
    %p38 = pneg %p32
    %p39 = scmp.eq.s32.totalorder %s11, 3
    %p40 = por %p38, %p39
    %p41 = scmp.ne.s32.totalorder %s33, %s36
    %p42 = scmp.eq.s32.totalorder %s11, 0
    %p43 = por %p41, %p42
    %p44 = scmp.ne.s32.totalorder %s33, %s36
    %p45 = scmp.eq.s32.totalorder %s16, 3
    %p46 = por %p44, %p45
    %p47 = scmp.ne.s32.totalorder %s36, %s37
    %p48 = scmp.eq.s32.totalorder %s16, 0
    %p49 = por %p47, %p48
    %p50 = scmp.ne.s32.totalorder %s36, %s37
    %p51 = scmp.eq.s32.totalorder %s17, 3
    %p52 = por %p50, %p51
    %p54 = scmp.ne.s32.totalorder %s37, %s53
    %p55 = scmp.eq.s32.totalorder %s17, 0
    %p56 = por %p54, %p55
    %s58 = sadd.s32 %s57, 1
    %p61 = scmp.eq.s32.totalorder %s11, 3
    %p62 = scmp.ne.s32.totalorder %s57, %s59
    %p63 = scmp.eq.s32.totalorder %s11, 0
    %p64 = por %p62, %p63
    %p65 = scmp.ne.s32.totalorder %s57, %s59
    %p66 = scmp.eq.s32.totalorder %s16, 3
    %p67 = por %p65, %p66
    %p68 = scmp.ne.s32.totalorder %s59, %s60
    %p69 = scmp.eq.s32.totalorder %s16, 0
    %p70 = por %p68, %p69
    %p71 = scmp.ne.s32.totalorder %s59, %s60
    %p72 = scmp.eq.s32.totalorder %s17, 3
    %p73 = por %p71, %p72
    %p75 = scmp.ne.s32.totalorder %s60, %s74
    %p76 = scmp.eq.s32.totalorder %s17, 0
    %p77 = por %p75, %p76
    %s78 = smul.u32 %s18, 2
    %s79 = sadd.s32 %s78, %s19
    %s80 = smul.u32 %s30, 2
    %s81 = sadd.s32 %s80, %s26
    %s82 = ssub.s32 %s79, %s81
    %p83 = scmp.eq.s32.totalorder %s82, 0
    %s85 = sadd.s32 %s84, 1
    %s86 = scalar_select %p83, %s84, %s85
    %p89 = pneg %p83
    %p90 = scmp.eq.s32.totalorder %s11, 3
    %p91 = por %p89, %p90
    %p92 = scmp.ne.s32.totalorder %s84, %s87
    %p93 = scmp.eq.s32.totalorder %s11, 0
    %p94 = por %p92, %p93
    %p95 = scmp.ne.s32.totalorder %s84, %s87
    %p96 = scmp.eq.s32.totalorder %s16, 3
    %p97 = por %p95, %p96
    %p98 = scmp.ne.s32.totalorder %s87, %s88
    %p99 = scmp.eq.s32.totalorder %s16, 0
    %p100 = por %p98, %p99
    %p101 = scmp.ne.s32.totalorder %s87, %s88
    %p102 = scmp.eq.s32.totalorder %s17, 3
    %p103 = por %p101, %p102
    %p105 = scmp.ne.s32.totalorder %s88, %s104
    %p106 = scmp.eq.s32.totalorder %s17, 0
    %p107 = por %p105, %p106
    %s108 = ssub.s32 %s18, %s30
    %s109 = ssub.s32 %s19, %s26
    %s110 = sor.u32 %s108, %s109
    %p111 = scmp.eq.s32.totalorder %s110, 0
    %s113 = sadd.s32 %s112, 1
    %s114 = scalar_select %p111, %s112, %s113
    %p117 = pneg %p111
    %p118 = scmp.eq.s32.totalorder %s11, 3
    %p119 = por %p117, %p118
    %p120 = scmp.ne.s32.totalorder %s112, %s115
    %p121 = scmp.eq.s32.totalorder %s11, 0
    %p122 = por %p120, %p121
    %p123 = scmp.ne.s32.totalorder %s112, %s115
    %p124 = scmp.eq.s32.totalorder %s16, 3
    %p125 = por %p123, %p124
    %p126 = scmp.ne.s32.totalorder %s115, %s116
    %p127 = scmp.eq.s32.totalorder %s16, 0
    %p128 = por %p126, %p127
    %p129 = scmp.ne.s32.totalorder %s115, %s116
    %p130 = scmp.eq.s32.totalorder %s17, 3
    %p131 = por %p129, %p130
    %p133 = scmp.ne.s32.totalorder %s116, %s132
    %p134 = scmp.eq.s32.totalorder %s17, 0
    %p135 = por %p133, %p134
    %s136 = ssub.s32 %s18, %s30
    %s137 = ssub.s32 %s19, %s26
    %s138 = sor.u32 %s136, %s137
    %p139 = scmp.eq.s32.totalorder %s138, 0
    %s141 = sadd.s32 %s140, 1
    %s142 = scalar_select %p139, %s140, %s141
    %p145 = pneg %p139
    %p146 = scmp.eq.s32.totalorder %s11, 3
    %p147 = por %p145, %p146
    %p148 = scmp.ne.s32.totalorder %s140, %s143
    %p149 = scmp.eq.s32.totalorder %s11, 0
    %p150 = por %p148, %p149
    %p151 = scmp.ne.s32.totalorder %s140, %s143
    %p152 = scmp.eq.s32.totalorder %s16, 3
    %p153 = por %p151, %p152
    %p154 = scmp.ne.s32.totalorder %s143, %s144
    %p155 = scmp.eq.s32.totalorder %s16, 0
    %p156 = por %p154, %p155
    %p157 = scmp.ne.s32.totalorder %s143, %s144
    %p158 = scmp.eq.s32.totalorder %s17, 3
    %p159 = por %p157, %p158
    %p161 = scmp.ne.s32.totalorder %s144, %s160
    %p162 = scmp.eq.s32.totalorder %s17, 0
    %p163 = por %p161, %p162
    %p164 = scmp.le.s32.totalorder 1, %s11
    %p165 = scmp.lt.s32.totalorder %s11, 5
    %p166 = pnand %p164, %p165
    %p167 = pneg %p166
    // Predicated region
    $region9: #{encode_layer.2} parent=5 // pred_check
      _
    $region10: #{encode_layer.2} parent=5 // pred_check_branch
      %169 = sbr.rel (%p166) target = $region12
    $region11: #{encode_layer.2} parent=5 // pred_region
      %s170 = ssub.s32 %s11, 1
      // Predicated region
      $region13: #{encode_layer.2} parent=11 // pred_check
        %p171 = pneg %p70
      $region14: #{encode_layer.2} parent=11 // pred_check_branch
        %173 = sbr.rel (%p171) target = $region16
      $region15: #{encode_layer.2} parent=11 // pred_region
        _
      $region16: #{encode_layer.2} parent=11 // pred_fallthru
        _
    $region12: #{encode_layer.2} parent=5 // pred_fallthru
      _
    %p174 = scmp.lt.s32.totalorder %s11, 4
    // Predicated region
    $region17: #{encode_layer.2} parent=5 // pred_check
      %p175 = pneg %p174
    $region18: #{encode_layer.2} parent=5 // pred_check_branch
      %177 = sbr.rel (%p175) target = $region20
    $region19: #{encode_layer.2} parent=5 // pred_region
      // Predicated region
      $region21: #{encode_layer.2} parent=19 // pred_check
        %p178 = pneg %p43
      $region22: #{encode_layer.2} parent=19 // pred_check_branch
        %180 = sbr.rel (%p178) target = $region24
      $region23: #{encode_layer.2} parent=19 // pred_region
        %p181 = scmp.lt.s32.totalorder %s18, 1
        %s182 = scalar_select %p181, %s18, 1
        %s183 = smul.addr %s182, 72
        %s184 = smul.addr %s183, 4
        %s185 = scalar_lea.vmem %s0, %s184
      $region24: #{encode_layer.2} parent=19 // pred_fallthru
        _
    $region20: #{encode_layer.2} parent=5 // pred_fallthru
      _
    %p186 = scmp.le.s32.totalorder 1, %s11
    %p187 = scmp.lt.s32.totalorder %s11, 5
    %p188 = pnand %p186, %p187
    %p189 = pneg %p188
    // Predicated region
    $region25: #{encode_layer.2} parent=5 // pred_check
      _
    $region26: #{encode_layer.2} parent=5 // pred_check_branch
      %191 = sbr.rel (%p188) target = $region28
    $region27: #{encode_layer.2} parent=5 // pred_region
      %s192 = ssub.s32 %s11, 1
      %p193 = scmp.lt.s32.totalorder %s20, 1
      %s194 = scalar_select %p193, %s20, 1
      %s195 = smul.addr %s194, 72
      %s196 = smul.addr %s195, 4
      %s197 = scalar_lea.vmem %s0, %s196
      %p198 = pneg %p49
      %p199 = pneg %p46
      %p200 = pneg %p70
      %p201 = pneg %p67
      %p202 = pneg %p100
      %p203 = pneg %p97
      %s204 = smul.u32 %s20, 2
      %s205 = sadd.s32 %s204, %s21
      %p206 = scmp.lt.s32.totalorder %s205, 3
      %s207 = scalar_select %p206, %s205, 3
      %s208 = smul.addr %s207, 4
      %s209 = smul.addr %s208, 4
      %s210 = scalar_lea.vmem %s2, %s209
      %p211 = pneg %p128
      %p212 = pneg %p125
      %p213 = scmp.lt.s32.totalorder %s20, 1
      %s214 = scalar_select %p213, %s20, 1
      %p215 = scmp.lt.s32.totalorder %s21, 1
      %s216 = scalar_select %p215, %s21, 1
      %s217 = smul.addr %s214, 2
      %s218 = sadd.s32 %s216, %s217
      %s219 = smul.addr %s218, 8
      %s220 = scalar_lea.vmem %s3, %s219
      %p221 = pneg %p156
      %p222 = pneg %p153
      %p223 = scmp.lt.s32.totalorder %s20, 1
      %s224 = scalar_select %p223, %s20, 1
      %p225 = scmp.lt.s32.totalorder %s21, 1
      %s226 = scalar_select %p225, %s21, 1
      %s227 = smul.addr %s224, 2
      %s228 = sadd.s32 %s226, %s227
      %s229 = smul.addr %s228, 8
      %s230 = scalar_lea.vmem %s4, %s229
      %p231 = scmp.lt.s32.totalorder %s20, 1
      %s232 = scalar_select %p231, %s20, 1
      %s233 = smul.addr %s232, 72
      %s234 = smul.addr %s233, 4
      %s235 = scalar_lea.vmem %s0, %s234
      %s236 = smul.u32 %s20, 2
      %s237 = sadd.s32 %s236, %s21
      %p238 = scmp.lt.s32.totalorder %s237, 3
      %s239 = scalar_select %p238, %s237, 3
      %s240 = smul.addr %s239, 4
      %s241 = smul.addr %s240, 4
      %s242 = scalar_lea.vmem %s2, %s241
      %s243 = smul.u32 %s20, 2
      %s244 = sadd.s32 %s243, %s21
      %p245 = scmp.lt.s32.totalorder %s20, 1
      %s246 = scalar_select %p245, %s20, 1
      %p247 = scmp.lt.s32.totalorder %s21, 1
      %s248 = scalar_select %p247, %s21, 1
      %s249 = smul.addr %s246, 2
      %s250 = sadd.s32 %s248, %s249
      %s251 = smul.addr %s250, 8
      %s252 = scalar_lea.vmem %s3, %s251
      %p253 = scmp.lt.s32.totalorder %s20, 1
      %s254 = scalar_select %p253, %s20, 1
      %p255 = scmp.lt.s32.totalorder %s21, 1
      %s256 = scalar_select %p255, %s21, 1
      %s257 = smul.addr %s254, 2
      %s258 = sadd.s32 %s256, %s257
      %s259 = smul.addr %s258, 8
      %s260 = scalar_lea.vmem %s4, %s259
      %s262 = smul.u32 %s21, 4
      %s263 = smul.u32 %s262, 2
      %s264 = smul.addr %s263, 4
      %s265 = scalar_lea.vmem %s235, %s264
      %v266 = vld [vmem:[%s265] sm:$0xf]
      %v267 = vld [vmem:[%s265 + $0x8] sm:$0xf]
      %v268 = vld [vmem:[%s265 + $0x10] sm:$0xf]
      %v269 = vld [vmem:[%s265 + $0x18] sm:$0xf]
      %v270 = vld [vmem:[%s1] sm:$0x3]
      %s271 = sadd.s32 %s263, 18
      %s272 = smul.addr %s271, 4
      %s273 = scalar_lea.vmem %s235, %s272
      %v274 = vld [vmem:[%s273] sm:$0xf]
      %v275 = vld [vmem:[%s273 + $0x8] sm:$0xf]
      %v276 = vld [vmem:[%s273 + $0x10] sm:$0xf]
      %v277 = vld [vmem:[%s273 + $0x18] sm:$0xf]
      %s278 = scalar_lea.vmem %s1, 2
      %v279 = vld [vmem:[%s278] sm:$0x3]
      %v284 = vunpack.c.l.b16 %v274
      %v285 = vunpack.c.l.b16 %v275
      %v286 = vunpack.c.l.b16 %v276
      %v287 = vunpack.c.l.b16 %v277
      %v288 = vpack.c.b16 %v285, %v284
      %v289 = vpack.c.b16 %v287, %v286
      %vm290 = vcmask 31744
      %v292 = vsel %vm290, %v288, 0
      %v295 = vsel %vm290, %v289, 0
      %vm297 = vcmask 1041408
      %v299 = vsel %vm297, %v279, 0
      %301 = vmatprep.subr.bf16.mxu0 0
      %302 = vmatpush1.bf16.msra.mxu0 %v299
      %303 = vmatprep.subr.bf16.mxu0 0
      %304 = vmatpush1.bf16.msra.mxu0 0
      %305 = vmatprep.subr.bf16.mxu0 0
      %306 = vmatpush1.bf16.msra.mxu0 0
      %307 = vmatprep.subr.bf16.mxu0 0
      %308 = vmatpush1.bf16.msra.mxu0 0
      %309 = vmatprep.subr.bf16.mxu0 0
      %310 = vmatpush1.bf16.msra.mxu0 0
      %311 = vmatprep.subr.bf16.mxu0 0
      %312 = vmatpush1.bf16.msra.mxu0 0
      %313 = vmatprep.subr.bf16.mxu0 0
      %314 = vmatpush1.bf16.msra.mxu0 0
      %315 = vmatprep.subr.bf16.mxu0 0
      %316 = vmatpush1.bf16.msra.mxu0 0
      %317 = vmatprep.subr.bf16.mxu0 0
      %318 = vmatpush1.bf16.msra.mxu0 0
      %319 = vmatprep.subr.bf16.mxu0 0
      %320 = vmatpush1.bf16.msra.mxu0 0
      %321 = vmatprep.subr.bf16.mxu0 0
      %322 = vmatpush1.bf16.msra.mxu0 0
      %323 = vmatprep.subr.bf16.mxu0 0
      %324 = vmatpush1.bf16.msra.mxu0 0
      %325 = vmatprep.subr.bf16.mxu0 0
      %326 = vmatpush1.bf16.msra.mxu0 0
      %327 = vmatprep.subr.bf16.mxu0 0
      %328 = vmatpush1.bf16.msra.mxu0 0
      %329 = vmatprep.subr.bf16.mxu0 0
      %330 = vmatpush1.bf16.msra.mxu0 0
      %331 = vmatprep.subr.bf16.mxu0 0
      %332 = vmatpush1.bf16.msra.mxu0 0
      %333 = vmatprep.mubr.bf16.mxu0 0
      %334 = vmatmul.mubr.bf16.gmra.mrb[0].mxu0 %v292
      %v335 = vpop.f32.mrb[0].mxu0
      %v336 = vadd.f32 0.0, %v335
      %v337 = vpop.f32.mrb[0].mxu0
      %v338 = vpop.f32.mrb[0].mxu0
      %v339 = vadd.f32 0.0, %v338
      %v340 = vpop.f32.mrb[0].mxu0
      %341 = vmatprep.mubr.bf16.mxu0 0
      %342 = vmatmul.mubr.bf16.gmra.mrb[0].mxu0 %v295
      %v343 = vpop.f32.mrb[0].mxu0
      %v344 = vadd.f32 0.0, %v343
      %v345 = vpop.f32.mrb[0].mxu0
      %v346 = vpop.f32.mrb[0].mxu0
      %v347 = vadd.f32 0.0, %v346
      %v348 = vpop.f32.mrb[0].mxu0
      %349 = vdwg.mxu0
      %v354 = vunpack.c.l.b16 %v266
      %v355 = vunpack.c.l.b16 %v267
      %v356 = vunpack.c.l.b16 %v268
      %v357 = vunpack.c.l.b16 %v269
      %v358 = vpack.c.b16 %v355, %v354
      %v359 = vpack.c.b16 %v357, %v356
      %v361 = vsel %vm290, %v358, 0
      %v364 = vsel %vm290, %v359, 0
      %v367 = vsel %vm297, %v270, 0
      %369 = vmatprep.subr.bf16.mxu0 0
      %370 = vmatpush1.bf16.msra.mxu0 %v367
      %371 = vmatprep.subr.bf16.mxu0 0
      %372 = vmatpush1.bf16.msra.mxu0 0
      %373 = vmatprep.subr.bf16.mxu0 0
      %374 = vmatpush1.bf16.msra.mxu0 0
      %375 = vmatprep.subr.bf16.mxu0 0
      %376 = vmatpush1.bf16.msra.mxu0 0
      %377 = vmatprep.subr.bf16.mxu0 0
      %378 = vmatpush1.bf16.msra.mxu0 0
      %379 = vmatprep.subr.bf16.mxu0 0
      %380 = vmatpush1.bf16.msra.mxu0 0
      %381 = vmatprep.subr.bf16.mxu0 0
      %382 = vmatpush1.bf16.msra.mxu0 0
      %383 = vmatprep.subr.bf16.mxu0 0
      %384 = vmatpush1.bf16.msra.mxu0 0
      %385 = vmatprep.subr.bf16.mxu0 0
      %386 = vmatpush1.bf16.msra.mxu0 0
      %387 = vmatprep.subr.bf16.mxu0 0
      %388 = vmatpush1.bf16.msra.mxu0 0
      %389 = vmatprep.subr.bf16.mxu0 0
      %390 = vmatpush1.bf16.msra.mxu0 0
      %391 = vmatprep.subr.bf16.mxu0 0
      %392 = vmatpush1.bf16.msra.mxu0 0
      %393 = vmatprep.subr.bf16.mxu0 0
      %394 = vmatpush1.bf16.msra.mxu0 0
      %395 = vmatprep.subr.bf16.mxu0 0
      %396 = vmatpush1.bf16.msra.mxu0 0
      %397 = vmatprep.subr.bf16.mxu0 0
      %398 = vmatpush1.bf16.msra.mxu0 0
      %399 = vmatprep.subr.bf16.mxu0 0
      %400 = vmatpush1.bf16.msra.mxu0 0
      %401 = vmatprep.mubr.bf16.mxu0 0
      %402 = vmatmul.mubr.bf16.gmra.mrb[0].mxu0 %v361
      %v403 = vpop.f32.mrb[0].mxu0
      %v404 = vadd.f32 %v336, %v403
      %v405 = vpop.f32.mrb[0].mxu0
      %v406 = vpop.f32.mrb[0].mxu0
      %v407 = vadd.f32 %v339, %v406
      %v408 = vpop.f32.mrb[0].mxu0
      %409 = vmatprep.mubr.bf16.mxu0 0
      %410 = vmatmul.mubr.bf16.gmra.mrb[0].mxu0 %v364
      %v411 = vpop.f32.mrb[0].mxu0
      %v412 = vadd.f32 %v344, %v411
      %v413 = vpop.f32.mrb[0].mxu0
      %v414 = vpop.f32.mrb[0].mxu0
      %v415 = vadd.f32 %v347, %v414
      %v416 = vpop.f32.mrb[0].mxu0
      %417 = vdwg.mxu0
      %v418 = vld [vmem:[%s265] sm:$0xf]
      %v419 = vld [vmem:[%s265 + $0x4] sm:$0x1]
      %v420 = vld [vmem:[%s265 + $0x8] sm:$0xf]
      %v421 = vld [vmem:[%s265 + $0xc] sm:$0x1]
      %v422 = vld [vmem:[%s265 + $0x10] sm:$0xf]
      %v423 = vld [vmem:[%s265 + $0x14] sm:$0x1]
      %v424 = vld [vmem:[%s265 + $0x18] sm:$0xf]
      %v425 = vld [vmem:[%s265 + $0x1c] sm:$0x1]
      %vm426 = vsmask.f32 3328
      %vm427 = vsmask.f32 7440
      %vm428 = vmor %vm426, %vm427
      %v430 = vshrl.u32 %v418, 16
      %v432 = vrot.slane %v430, 4
      %v433 = vshll.u32 %v418, 16
      %v435 = vrot.slane %v433, 5
      %v436 = vor.u32 %v432, %v435
      %v437 = vrot.slane %v436, 4
      %v439 = vshll.u32 %v419, 16
      %v441 = vrot.slane %v439, 5
      %v442 = vsel %vm428, %v437, %v441
      %v444 = vshrl.u32 %v420, 16
      %v446 = vrot.slane %v444, 4
      %v447 = vshll.u32 %v420, 16
      %v449 = vrot.slane %v447, 5
      %v450 = vor.u32 %v446, %v449
      %v451 = vrot.slane %v450, 4
      %v453 = vshll.u32 %v421, 16
      %v455 = vrot.slane %v453, 5
      %v456 = vsel %vm428, %v451, %v455
      %v458 = vshrl.u32 %v422, 16
      %v460 = vrot.slane %v458, 4
      %v461 = vshll.u32 %v422, 16
      %v463 = vrot.slane %v461, 5
      %v464 = vor.u32 %v460, %v463
      %v465 = vrot.slane %v464, 4
      %v467 = vshll.u32 %v423, 16
      %v469 = vrot.slane %v467, 5
      %v470 = vsel %vm428, %v465, %v469
      %v472 = vshrl.u32 %v424, 16
      %v474 = vrot.slane %v472, 4
      %v475 = vshll.u32 %v424, 16
      %v477 = vrot.slane %v475, 5
      %v478 = vor.u32 %v474, %v477
      %v479 = vrot.slane %v478, 4
      %v481 = vshll.u32 %v425, 16
      %v483 = vrot.slane %v481, 5
      %v484 = vsel %vm428, %v479, %v483
      %s485 = scalar_lea.vmem %s1, 4
      %v486 = vld [vmem:[%s485] sm:$0x3]
      %v487 = vunpack.c.l.b16 %v442
      %v488 = vunpack.c.l.b16 %v456
      %v489 = vunpack.c.l.b16 %v470
      %v490 = vunpack.c.l.b16 %v484
      %v491 = vpack.c.b16 %v488, %v487
      %v492 = vpack.c.b16 %v490, %v489
      %v494 = vsel %vm290, %v491, 0
      %v497 = vsel %vm290, %v492, 0
      %v500 = vsel %vm297, %v486, 0
      %502 = vmatprep.subr.bf16.mxu0 0
      %503 = vmatpush1.bf16.msra.mxu0 %v500
      %504 = vmatprep.subr.bf16.mxu0 0
      %505 = vmatpush1.bf16.msra.mxu0 0
      %506 = vmatprep.subr.bf16.mxu0 0
      %507 = vmatpush1.bf16.msra.mxu0 0
      %508 = vmatprep.subr.bf16.mxu0 0
      %509 = vmatpush1.bf16.msra.mxu0 0
      %510 = vmatprep.subr.bf16.mxu0 0
      %511 = vmatpush1.bf16.msra.mxu0 0
      %512 = vmatprep.subr.bf16.mxu0 0
      %513 = vmatpush1.bf16.msra.mxu0 0
      %514 = vmatprep.subr.bf16.mxu0 0
      %515 = vmatpush1.bf16.msra.mxu0 0
      %516 = vmatprep.subr.bf16.mxu0 0
      %517 = vmatpush1.bf16.msra.mxu0 0
      %518 = vmatprep.subr.bf16.mxu0 0
      %519 = vmatpush1.bf16.msra.mxu0 0
      %520 = vmatprep.subr.bf16.mxu0 0
      %521 = vmatpush1.bf16.msra.mxu0 0
      %522 = vmatprep.subr.bf16.mxu0 0
      %523 = vmatpush1.bf16.msra.mxu0 0
      %524 = vmatprep.subr.bf16.mxu0 0
      %525 = vmatpush1.bf16.msra.mxu0 0
      %526 = vmatprep.subr.bf16.mxu0 0
      %527 = vmatpush1.bf16.msra.mxu0 0
      %528 = vmatprep.subr.bf16.mxu0 0
      %529 = vmatpush1.bf16.msra.mxu0 0
      %530 = vmatprep.subr.bf16.mxu0 0
      %531 = vmatpush1.bf16.msra.mxu0 0
      %532 = vmatprep.subr.bf16.mxu0 0
      %533 = vmatpush1.bf16.msra.mxu0 0
      %534 = vmatprep.mubr.bf16.mxu0 0
      %535 = vmatmul.mubr.bf16.gmra.mrb[0].mxu0 %v494
      %v536 = vpop.f32.mrb[0].mxu0
      %v537 = vadd.f32 0.0, %v536
      %v538 = vpop.f32.mrb[0].mxu0
      %v539 = vpop.f32.mrb[0].mxu0
      %v540 = vadd.f32 0.0, %v539
      %v541 = vpop.f32.mrb[0].mxu0
      %542 = vmatprep.mubr.bf16.mxu0 0
      %543 = vmatmul.mubr.bf16.gmra.mrb[0].mxu0 %v497
      %v544 = vpop.f32.mrb[0].mxu0
      %v545 = vadd.f32 0.0, %v544
      %v546 = vpop.f32.mrb[0].mxu0
      %v547 = vpop.f32.mrb[0].mxu0
      %v548 = vadd.f32 0.0, %v547
      %v549 = vpop.f32.mrb[0].mxu0
      %550 = vdwg.mxu0
      %v551 = vadd.f32 %v404, %v537
      %v552 = vadd.f32 %v407, %v540
      %v553 = vadd.f32 %v412, %v545
      %v554 = vadd.f32 %v415, %v548
      %v555 = vld [vmem:[%s273] sm:$0xf]
      %v556 = vld [vmem:[%s273 + $0x4] sm:$0x1]
      %v557 = vld [vmem:[%s273 + $0x8] sm:$0xf]
      %v558 = vld [vmem:[%s273 + $0xc] sm:$0x1]
      %v559 = vld [vmem:[%s273 + $0x10] sm:$0xf]
      %v560 = vld [vmem:[%s273 + $0x14] sm:$0x1]
      %v561 = vld [vmem:[%s273 + $0x18] sm:$0xf]
      %v562 = vld [vmem:[%s273 + $0x1c] sm:$0x1]
      %v564 = vshrl.u32 %v555, 16
      %v566 = vrot.slane %v564, 4
      %v567 = vshll.u32 %v555, 16
      %v569 = vrot.slane %v567, 5
      %v570 = vor.u32 %v566, %v569
      %v571 = vrot.slane %v570, 4
      %v573 = vshll.u32 %v556, 16
      %v575 = vrot.slane %v573, 5
      %v576 = vsel %vm428, %v571, %v575
      %v578 = vshrl.u32 %v557, 16
      %v580 = vrot.slane %v578, 4
      %v581 = vshll.u32 %v557, 16
      %v583 = vrot.slane %v581, 5
      %v584 = vor.u32 %v580, %v583
      %v585 = vrot.slane %v584, 4
      %v587 = vshll.u32 %v558, 16
      %v589 = vrot.slane %v587, 5
      %v590 = vsel %vm428, %v585, %v589
      %v592 = vshrl.u32 %v559, 16
      %v594 = vrot.slane %v592, 4
      %v595 = vshll.u32 %v559, 16
      %v597 = vrot.slane %v595, 5
      %v598 = vor.u32 %v594, %v597
      %v599 = vrot.slane %v598, 4
      %v601 = vshll.u32 %v560, 16
      %v603 = vrot.slane %v601, 5
      %v604 = vsel %vm428, %v599, %v603
      %v606 = vshrl.u32 %v561, 16
      %v608 = vrot.slane %v606, 4
      %v609 = vshll.u32 %v561, 16
      %v611 = vrot.slane %v609, 5
      %v612 = vor.u32 %v608, %v611
      %v613 = vrot.slane %v612, 4
      %v615 = vshll.u32 %v562, 16
      %v617 = vrot.slane %v615, 5
      %v618 = vsel %vm428, %v613, %v617
      %s619 = scalar_lea.vmem %s1, 6
      %v620 = vld [vmem:[%s619] sm:$0x3]
      %v621 = vunpack.c.l.b16 %v576
      %v622 = vunpack.c.l.b16 %v590
      %v623 = vunpack.c.l.b16 %v604
      %v624 = vunpack.c.l.b16 %v618
      %v625 = vpack.c.b16 %v622, %v621
      %v626 = vpack.c.b16 %v624, %v623
      %v628 = vsel %vm290, %v625, 0
      %v631 = vsel %vm290, %v626, 0
      %v634 = vsel %vm297, %v620, 0
      %636 = vmatprep.subr.bf16.mxu0 0
      %637 = vmatpush1.bf16.msra.mxu0 %v634
      %638 = vmatprep.subr.bf16.mxu0 0
      %639 = vmatpush1.bf16.msra.mxu0 0
      %640 = vmatprep.subr.bf16.mxu0 0
      %641 = vmatpush1.bf16.msra.mxu0 0
      %642 = vmatprep.subr.bf16.mxu0 0
      %643 = vmatpush1.bf16.msra.mxu0 0
      %644 = vmatprep.subr.bf16.mxu0 0
      %645 = vmatpush1.bf16.msra.mxu0 0
      %646 = vmatprep.subr.bf16.mxu0 0
      %647 = vmatpush1.bf16.msra.mxu0 0
      %648 = vmatprep.subr.bf16.mxu0 0
      %649 = vmatpush1.bf16.msra.mxu0 0
      %650 = vmatprep.subr.bf16.mxu0 0
      %651 = vmatpush1.bf16.msra.mxu0 0
      %652 = vmatprep.subr.bf16.mxu0 0
      %653 = vmatpush1.bf16.msra.mxu0 0
      %654 = vmatprep.subr.bf16.mxu0 0
      %655 = vmatpush1.bf16.msra.mxu0 0
      %656 = vmatprep.subr.bf16.mxu0 0
      %657 = vmatpush1.bf16.msra.mxu0 0
      %658 = vmatprep.subr.bf16.mxu0 0
      %659 = vmatpush1.bf16.msra.mxu0 0
      %660 = vmatprep.subr.bf16.mxu0 0
      %661 = vmatpush1.bf16.msra.mxu0 0
      %662 = vmatprep.subr.bf16.mxu0 0
      %663 = vmatpush1.bf16.msra.mxu0 0
      %664 = vmatprep.subr.bf16.mxu0 0
      %665 = vmatpush1.bf16.msra.mxu0 0
      %666 = vmatprep.subr.bf16.mxu0 0
      %667 = vmatpush1.bf16.msra.mxu0 0
      %668 = vmatprep.mubr.bf16.mxu0 0
      %669 = vmatmul.mubr.bf16.gmra.mrb[0].mxu0 %v628
      %v670 = vpop.f32.mrb[0].mxu0
      %v671 = vadd.f32 0.0, %v670
      %v672 = vpop.f32.mrb[0].mxu0
      %v673 = vpop.f32.mrb[0].mxu0
      %v674 = vadd.f32 0.0, %v673
      %v675 = vpop.f32.mrb[0].mxu0
      %676 = vmatprep.mubr.bf16.mxu0 0
      %677 = vmatmul.mubr.bf16.gmra.mrb[0].mxu0 %v631
      %v678 = vpop.f32.mrb[0].mxu0
      %v679 = vadd.f32 0.0, %v678
      %v680 = vpop.f32.mrb[0].mxu0
      %v681 = vpop.f32.mrb[0].mxu0
      %v682 = vadd.f32 0.0, %v681
      %v683 = vpop.f32.mrb[0].mxu0
      %684 = vdwg.mxu0
      %v685 = vadd.f32 %v551, %v671
      %v686 = vadd.f32 %v552, %v674
      %v687 = vadd.f32 %v553, %v679
      %v688 = vadd.f32 %v554, %v682
      %s689 = sadd.s32 %s263, 36
      %s690 = smul.addr %s689, 4
      %s691 = scalar_lea.vmem %s235, %s690
      %v692 = vld [vmem:[%s691] sm:$0xf]
      %v693 = vld [vmem:[%s691 + $0x8] sm:$0xf]
      %v694 = vld [vmem:[%s691 + $0x10] sm:$0xf]
      %v695 = vld [vmem:[%s691 + $0x18] sm:$0xf]
      %s696 = scalar_lea.vmem %s1, 8
      %v697 = vld [vmem:[%s696] sm:$0x3]
      %v702 = vunpack.c.l.b16 %v692
      %v703 = vunpack.c.l.b16 %v693
      %v704 = vunpack.c.l.b16 %v694
      %v705 = vunpack.c.l.b16 %v695
      %v706 = vpack.c.b16 %v703, %v702
      %v707 = vpack.c.b16 %v705, %v704
      %v709 = vsel %vm290, %v706, 0
      %v712 = vsel %vm290, %v707, 0
      %v715 = vsel %vm297, %v697, 0
      %717 = vmatprep.subr.bf16.mxu0 0
      %718 = vmatpush1.bf16.msra.mxu0 %v715
      %719 = vmatprep.subr.bf16.mxu0 0
      %720 = vmatpush1.bf16.msra.mxu0 0
      %721 = vmatprep.subr.bf16.mxu0 0
      %722 = vmatpush1.bf16.msra.mxu0 0
      %723 = vmatprep.subr.bf16.mxu0 0
      %724 = vmatpush1.bf16.msra.mxu0 0
      %725 = vmatprep.subr.bf16.mxu0 0
      %726 = vmatpush1.bf16.msra.mxu0 0
      %727 = vmatprep.subr.bf16.mxu0 0
      %728 = vmatpush1.bf16.msra.mxu0 0
      %729 = vmatprep.subr.bf16.mxu0 0
      %730 = vmatpush1.bf16.msra.mxu0 0
      %731 = vmatprep.subr.bf16.mxu0 0
      %732 = vmatpush1.bf16.msra.mxu0 0
      %733 = vmatprep.subr.bf16.mxu0 0
      %734 = vmatpush1.bf16.msra.mxu0 0
      %735 = vmatprep.subr.bf16.mxu0 0
      %736 = vmatpush1.bf16.msra.mxu0 0
      %737 = vmatprep.subr.bf16.mxu0 0
      %738 = vmatpush1.bf16.msra.mxu0 0
      %739 = vmatprep.subr.bf16.mxu0 0
      %740 = vmatpush1.bf16.msra.mxu0 0
      %741 = vmatprep.subr.bf16.mxu0 0
      %742 = vmatpush1.bf16.msra.mxu0 0
      %743 = vmatprep.subr.bf16.mxu0 0
      %744 = vmatpush1.bf16.msra.mxu0 0
      %745 = vmatprep.subr.bf16.mxu0 0
      %746 = vmatpush1.bf16.msra.mxu0 0
      %747 = vmatprep.subr.bf16.mxu0 0
      %748 = vmatpush1.bf16.msra.mxu0 0
      %749 = vmatprep.mubr.bf16.mxu0 0
      %750 = vmatmul.mubr.bf16.gmra.mrb[0].mxu0 %v709
      %v751 = vpop.f32.mrb[0].mxu0
      %v752 = vadd.f32 0.0, %v751
      %v753 = vpop.f32.mrb[0].mxu0
      %v754 = vpop.f32.mrb[0].mxu0
      %v755 = vadd.f32 0.0, %v754
      %v756 = vpop.f32.mrb[0].mxu0
      %757 = vmatprep.mubr.bf16.mxu0 0
      %758 = vmatmul.mubr.bf16.gmra.mrb[0].mxu0 %v712
      %v759 = vpop.f32.mrb[0].mxu0
      %v760 = vadd.f32 0.0, %v759
      %v761 = vpop.f32.mrb[0].mxu0
      %v762 = vpop.f32.mrb[0].mxu0
      %v763 = vadd.f32 0.0, %v762
      %v764 = vpop.f32.mrb[0].mxu0
      %765 = vdwg.mxu0
      %v766 = vadd.f32 %v685, %v752
      %v767 = vadd.f32 %v686, %v755
      %v768 = vadd.f32 %v687, %v760
      %v769 = vadd.f32 %v688, %v763
      %s770 = sadd.s32 %s263, 54
      %s771 = smul.addr %s770, 4
      %s772 = scalar_lea.vmem %s235, %s771
      %v773 = vld [vmem:[%s772] sm:$0xf]
      %v774 = vld [vmem:[%s772 + $0x8] sm:$0xf]
      %v775 = vld [vmem:[%s772 + $0x10] sm:$0xf]
      %v776 = vld [vmem:[%s772 + $0x18] sm:$0xf]
      %s777 = scalar_lea.vmem %s1, 10
      %v778 = vld [vmem:[%s777] sm:$0x3]
      %v783 = vunpack.c.l.b16 %v773
      %v784 = vunpack.c.l.b16 %v774
      %v785 = vunpack.c.l.b16 %v775
      %v786 = vunpack.c.l.b16 %v776
      %v787 = vpack.c.b16 %v784, %v783
      %v788 = vpack.c.b16 %v786, %v785
      %v790 = vsel %vm290, %v787, 0
      %v793 = vsel %vm290, %v788, 0
      %v796 = vsel %vm297, %v778, 0
      %798 = vmatprep.subr.bf16.mxu0 0
      %799 = vmatpush1.bf16.msra.mxu0 %v796
      %800 = vmatprep.subr.bf16.mxu0 0
      %801 = vmatpush1.bf16.msra.mxu0 0
      %802 = vmatprep.subr.bf16.mxu0 0
      %803 = vmatpush1.bf16.msra.mxu0 0
      %804 = vmatprep.subr.bf16.mxu0 0
      %805 = vmatpush1.bf16.msra.mxu0 0
      %806 = vmatprep.subr.bf16.mxu0 0
      %807 = vmatpush1.bf16.msra.mxu0 0
      %808 = vmatprep.subr.bf16.mxu0 0
      %809 = vmatpush1.bf16.msra.mxu0 0
      %810 = vmatprep.subr.bf16.mxu0 0
      %811 = vmatpush1.bf16.msra.mxu0 0
      %812 = vmatprep.subr.bf16.mxu0 0
      %813 = vmatpush1.bf16.msra.mxu0 0
      %814 = vmatprep.subr.bf16.mxu0 0
      %815 = vmatpush1.bf16.msra.mxu0 0
      %816 = vmatprep.subr.bf16.mxu0 0
      %817 = vmatpush1.bf16.msra.mxu0 0
      %818 = vmatprep.subr.bf16.mxu0 0
      %819 = vmatpush1.bf16.msra.mxu0 0
      %820 = vmatprep.subr.bf16.mxu0 0
      %821 = vmatpush1.bf16.msra.mxu0 0
      %822 = vmatprep.subr.bf16.mxu0 0
      %823 = vmatpush1.bf16.msra.mxu0 0
      %824 = vmatprep.subr.bf16.mxu0 0
      %825 = vmatpush1.bf16.msra.mxu0 0
      %826 = vmatprep.subr.bf16.mxu0 0
      %827 = vmatpush1.bf16.msra.mxu0 0
      %828 = vmatprep.subr.bf16.mxu0 0
      %829 = vmatpush1.bf16.msra.mxu0 0
      %830 = vmatprep.mubr.bf16.mxu0 0
      %831 = vmatmul.mubr.bf16.gmra.mrb[0].mxu0 %v790
      %v832 = vpop.f32.mrb[0].mxu0
      %v833 = vadd.f32 0.0, %v832
      %v834 = vpop.f32.mrb[0].mxu0
      %v835 = vpop.f32.mrb[0].mxu0
      %v836 = vadd.f32 0.0, %v835
      %v837 = vpop.f32.mrb[0].mxu0
      %838 = vmatprep.mubr.bf16.mxu0 0
      %839 = vmatmul.mubr.bf16.gmra.mrb[0].mxu0 %v793
      %v840 = vpop.f32.mrb[0].mxu0
      %v841 = vadd.f32 0.0, %v840
      %v842 = vpop.f32.mrb[0].mxu0
      %v843 = vpop.f32.mrb[0].mxu0
      %v844 = vadd.f32 0.0, %v843
      %v845 = vpop.f32.mrb[0].mxu0
      %846 = vdwg.mxu0
      %v847 = vadd.f32 %v766, %v833
      %v848 = vadd.f32 %v767, %v836
      %v849 = vadd.f32 %v768, %v841
      %v850 = vadd.f32 %v769, %v844
      %v851 = vld [vmem:[%s691] sm:$0xf]
      %v852 = vld [vmem:[%s691 + $0x4] sm:$0x1]
      %v853 = vld [vmem:[%s691 + $0x8] sm:$0xf]
      %v854 = vld [vmem:[%s691 + $0xc] sm:$0x1]
      %v855 = vld [vmem:[%s691 + $0x10] sm:$0xf]
      %v856 = vld [vmem:[%s691 + $0x14] sm:$0x1]
      %v857 = vld [vmem:[%s691 + $0x18] sm:$0xf]
      %v858 = vld [vmem:[%s691 + $0x1c] sm:$0x1]
      %v860 = vshrl.u32 %v851, 16
      %v862 = vrot.slane %v860, 4
      %v863 = vshll.u32 %v851, 16
      %v865 = vrot.slane %v863, 5
      %v866 = vor.u32 %v862, %v865
      %v867 = vrot.slane %v866, 4
      %v869 = vshll.u32 %v852, 16
      %v871 = vrot.slane %v869, 5
      %v872 = vsel %vm428, %v867, %v871
      %v874 = vshrl.u32 %v853, 16
      %v876 = vrot.slane %v874, 4
      %v877 = vshll.u32 %v853, 16
      %v879 = vrot.slane %v877, 5
      %v880 = vor.u32 %v876, %v879
      %v881 = vrot.slane %v880, 4
      %v883 = vshll.u32 %v854, 16
      %v885 = vrot.slane %v883, 5
      %v886 = vsel %vm428, %v881, %v885
      %v888 = vshrl.u32 %v855, 16
      %v890 = vrot.slane %v888, 4
      %v891 = vshll.u32 %v855, 16
      %v893 = vrot.slane %v891, 5
      %v894 = vor.u32 %v890, %v893
      %v895 = vrot.slane %v894, 4
      %v897 = vshll.u32 %v856, 16
      %v899 = vrot.slane %v897, 5
      %v900 = vsel %vm428, %v895, %v899
      %v902 = vshrl.u32 %v857, 16
      %v904 = vrot.slane %v902, 4
      %v905 = vshll.u32 %v857, 16
      %v907 = vrot.slane %v905, 5
      %v908 = vor.u32 %v904, %v907
      %v909 = vrot.slane %v908, 4
      %v911 = vshll.u32 %v858, 16
      %v913 = vrot.slane %v911, 5
      %v914 = vsel %vm428, %v909, %v913
      %s915 = scalar_lea.vmem %s1, 12
      %v916 = vld [vmem:[%s915] sm:$0x3]
      %v917 = vunpack.c.l.b16 %v872
      %v918 = vunpack.c.l.b16 %v886
      %v919 = vunpack.c.l.b16 %v900
      %v920 = vunpack.c.l.b16 %v914
      %v921 = vpack.c.b16 %v918, %v917
      %v922 = vpack.c.b16 %v920, %v919
      %v924 = vsel %vm290, %v921, 0
      %v927 = vsel %vm290, %v922, 0
      %v930 = vsel %vm297, %v916, 0
      %932 = vmatprep.subr.bf16.mxu0 0
      %933 = vmatpush1.bf16.msra.mxu0 %v930
      %934 = vmatprep.subr.bf16.mxu0 0
      %935 = vmatpush1.bf16.msra.mxu0 0
      %936 = vmatprep.subr.bf16.mxu0 0
      %937 = vmatpush1.bf16.msra.mxu0 0
      %938 = vmatprep.subr.bf16.mxu0 0
      %939 = vmatpush1.bf16.msra.mxu0 0
      %940 = vmatprep.subr.bf16.mxu0 0
      %941 = vmatpush1.bf16.msra.mxu0 0
      %942 = vmatprep.subr.bf16.mxu0 0
      %943 = vmatpush1.bf16.msra.mxu0 0
      %944 = vmatprep.subr.bf16.mxu0 0
      %945 = vmatpush1.bf16.msra.mxu0 0
      %946 = vmatprep.subr.bf16.mxu0 0
      %947 = vmatpush1.bf16.msra.mxu0 0
      %948 = vmatprep.subr.bf16.mxu0 0
      %949 = vmatpush1.bf16.msra.mxu0 0
      %950 = vmatprep.subr.bf16.mxu0 0
      %951 = vmatpush1.bf16.msra.mxu0 0
      %952 = vmatprep.subr.bf16.mxu0 0
      %953 = vmatpush1.bf16.msra.mxu0 0
      %954 = vmatprep.subr.bf16.mxu0 0
      %955 = vmatpush1.bf16.msra.mxu0 0
      %956 = vmatprep.subr.bf16.mxu0 0
      %957 = vmatpush1.bf16.msra.mxu0 0
      %958 = vmatprep.subr.bf16.mxu0 0
      %959 = vmatpush1.bf16.msra.mxu0 0
      %960 = vmatprep.subr.bf16.mxu0 0
      %961 = vmatpush1.bf16.msra.mxu0 0
      %962 = vmatprep.subr.bf16.mxu0 0
      %963 = vmatpush1.bf16.msra.mxu0 0
      %964 = vmatprep.mubr.bf16.mxu0 0
      %965 = vmatmul.mubr.bf16.gmra.mrb[0].mxu0 %v924
      %v966 = vpop.f32.mrb[0].mxu0
      %v967 = vadd.f32 0.0, %v966
      %v968 = vpop.f32.mrb[0].mxu0
      %v969 = vpop.f32.mrb[0].mxu0
      %v970 = vadd.f32 0.0, %v969
      %v971 = vpop.f32.mrb[0].mxu0
      %972 = vmatprep.mubr.bf16.mxu0 0
      %973 = vmatmul.mubr.bf16.gmra.mrb[0].mxu0 %v927
      %v974 = vpop.f32.mrb[0].mxu0
      %v975 = vadd.f32 0.0, %v974
      %v976 = vpop.f32.mrb[0].mxu0
      %v977 = vpop.f32.mrb[0].mxu0
      %v978 = vadd.f32 0.0, %v977
      %v979 = vpop.f32.mrb[0].mxu0
      %980 = vdwg.mxu0
      %v981 = vadd.f32 %v847, %v967
      %v982 = vadd.f32 %v848, %v970
      %v983 = vadd.f32 %v849, %v975
      %v984 = vadd.f32 %v850, %v978
      %v985 = vld [vmem:[%s772] sm:$0xf]
      %v986 = vld [vmem:[%s772 + $0x4] sm:$0x1]
      %v987 = vld [vmem:[%s772 + $0x8] sm:$0xf]
      %v988 = vld [vmem:[%s772 + $0xc] sm:$0x1]
      %v989 = vld [vmem:[%s772 + $0x10] sm:$0xf]
      %v990 = vld [vmem:[%s772 + $0x14] sm:$0x1]
      %v991 = vld [vmem:[%s772 + $0x18] sm:$0xf]
      %v992 = vld [vmem:[%s772 + $0x1c] sm:$0x1]
      %v994 = vshrl.u32 %v985, 16
      %v996 = vrot.slane %v994, 4
      %v997 = vshll.u32 %v985, 16
      %v999 = vrot.slane %v997, 5
      %v1000 = vor.u32 %v996, %v999
      %v1001 = vrot.slane %v1000, 4
      %v1003 = vshll.u32 %v986, 16
      %v1005 = vrot.slane %v1003, 5
      %v1006 = vsel %vm428, %v1001, %v1005
      %v1008 = vshrl.u32 %v987, 16
      %v1010 = vrot.slane %v1008, 4
      %v1011 = vshll.u32 %v987, 16
      %v1013 = vrot.slane %v1011, 5
      %v1014 = vor.u32 %v1010, %v1013
      %v1015 = vrot.slane %v1014, 4
      %v1017 = vshll.u32 %v988, 16
      %v1019 = vrot.slane %v1017, 5
      %v1020 = vsel %vm428, %v1015, %v1019
      %v1022 = vshrl.u32 %v989, 16
      %v1024 = vrot.slane %v1022, 4
      %v1025 = vshll.u32 %v989, 16
      %v1027 = vrot.slane %v1025, 5
      %v1028 = vor.u32 %v1024, %v1027
      %v1029 = vrot.slane %v1028, 4
      %v1031 = vshll.u32 %v990, 16
      %v1033 = vrot.slane %v1031, 5
      %v1034 = vsel %vm428, %v1029, %v1033
      %v1036 = vshrl.u32 %v991, 16
      %v1038 = vrot.slane %v1036, 4
      %v1039 = vshll.u32 %v991, 16
      %v1041 = vrot.slane %v1039, 5
      %v1042 = vor.u32 %v1038, %v1041
      %v1043 = vrot.slane %v1042, 4
      %v1045 = vshll.u32 %v992, 16
      %v1047 = vrot.slane %v1045, 5
      %v1048 = vsel %vm428, %v1043, %v1047
      %s1049 = scalar_lea.vmem %s1, 14
      %v1050 = vld [vmem:[%s1049] sm:$0x3]
      %v1051 = vunpack.c.l.b16 %v1006
      %v1052 = vunpack.c.l.b16 %v1020
      %v1053 = vunpack.c.l.b16 %v1034
      %v1054 = vunpack.c.l.b16 %v1048
      %v1055 = vpack.c.b16 %v1052, %v1051
      %v1056 = vpack.c.b16 %v1054, %v1053
      %v1058 = vsel %vm290, %v1055, 0
      %v1061 = vsel %vm290, %v1056, 0
      %v1064 = vsel %vm297, %v1050, 0
      %1066 = vmatprep.subr.bf16.mxu0 0
      %1067 = vmatpush1.bf16.msra.mxu0 %v1064
      %1068 = vmatprep.subr.bf16.mxu0 0
      %1069 = vmatpush1.bf16.msra.mxu0 0
      %1070 = vmatprep.subr.bf16.mxu0 0
      %1071 = vmatpush1.bf16.msra.mxu0 0
      %1072 = vmatprep.subr.bf16.mxu0 0
      %1073 = vmatpush1.bf16.msra.mxu0 0
      %1074 = vmatprep.subr.bf16.mxu0 0
      %1075 = vmatpush1.bf16.msra.mxu0 0
      %1076 = vmatprep.subr.bf16.mxu0 0
      %1077 = vmatpush1.bf16.msra.mxu0 0
      %1078 = vmatprep.subr.bf16.mxu0 0
      %1079 = vmatpush1.bf16.msra.mxu0 0
      %1080 = vmatprep.subr.bf16.mxu0 0
      %1081 = vmatpush1.bf16.msra.mxu0 0
      %1082 = vmatprep.subr.bf16.mxu0 0
      %1083 = vmatpush1.bf16.msra.mxu0 0
      %1084 = vmatprep.subr.bf16.mxu0 0
      %1085 = vmatpush1.bf16.msra.mxu0 0
      %1086 = vmatprep.subr.bf16.mxu0 0
      %1087 = vmatpush1.bf16.msra.mxu0 0
      %1088 = vmatprep.subr.bf16.mxu0 0
      %1089 = vmatpush1.bf16.msra.mxu0 0
      %1090 = vmatprep.subr.bf16.mxu0 0
      %1091 = vmatpush1.bf16.msra.mxu0 0
      %1092 = vmatprep.subr.bf16.mxu0 0
      %1093 = vmatpush1.bf16.msra.mxu0 0
      %1094 = vmatprep.subr.bf16.mxu0 0
      %1095 = vmatpush1.bf16.msra.mxu0 0
      %1096 = vmatprep.subr.bf16.mxu0 0
      %1097 = vmatpush1.bf16.msra.mxu0 0
      %1098 = vmatprep.mubr.bf16.mxu0 0
      %1099 = vmatmul.mubr.bf16.gmra.mrb[0].mxu0 %v1058
      %v1100 = vpop.f32.mrb[0].mxu0
      %v1101 = vadd.f32 0.0, %v1100
      %v1102 = vpop.f32.mrb[0].mxu0
      %v1103 = vpop.f32.mrb[0].mxu0
      %v1104 = vadd.f32 0.0, %v1103
      %v1105 = vpop.f32.mrb[0].mxu0
      %1106 = vmatprep.mubr.bf16.mxu0 0
      %1107 = vmatmul.mubr.bf16.gmra.mrb[0].mxu0 %v1061
      %v1108 = vpop.f32.mrb[0].mxu0
      %v1109 = vadd.f32 0.0, %v1108
      %v1110 = vpop.f32.mrb[0].mxu0
      %v1111 = vpop.f32.mrb[0].mxu0
      %v1112 = vadd.f32 0.0, %v1111
      %v1113 = vpop.f32.mrb[0].mxu0
      %1114 = vdwg.mxu0
      %v1115 = vadd.f32 %v981, %v1101
      %v1116 = vadd.f32 %v982, %v1104
      %v1117 = vadd.f32 %v983, %v1109
      %v1118 = vadd.f32 %v984, %v1112
      %s1119 = sadd.s32 %s262, 1
      %s1120 = smul.u32 %s1119, 2
      %s1121 = smul.addr %s1120, 4
      %s1122 = scalar_lea.vmem %s235, %s1121
      %v1123 = vld [vmem:[%s1122] sm:$0xf]
      %v1124 = vld [vmem:[%s1122 + $0x8] sm:$0xf]
      %v1125 = vld [vmem:[%s1122 + $0x10] sm:$0xf]
      %v1126 = vld [vmem:[%s1122 + $0x18] sm:$0xf]
      %s1127 = scalar_lea.vmem %s1, 16
      %v1128 = vld [vmem:[%s1127] sm:$0x3]
      %v1133 = vunpack.c.l.b16 %v1123
      %v1134 = vunpack.c.l.b16 %v1124
      %v1135 = vunpack.c.l.b16 %v1125
      %v1136 = vunpack.c.l.b16 %v1126
      %v1137 = vpack.c.b16 %v1134, %v1133
      %v1138 = vpack.c.b16 %v1136, %v1135
      %v1140 = vsel %vm290, %v1137, 0
      %v1143 = vsel %vm290, %v1138, 0
      %v1146 = vsel %vm297, %v1128, 0
      %1148 = vmatprep.subr.bf16.mxu0 0
      %1149 = vmatpush1.bf16.msra.mxu0 %v1146
      %1150 = vmatprep.subr.bf16.mxu0 0
      %1151 = vmatpush1.bf16.msra.mxu0 0
      %1152 = vmatprep.subr.bf16.mxu0 0
      %1153 = vmatpush1.bf16.msra.mxu0 0
      %1154 = vmatprep.subr.bf16.mxu0 0
      %1155 = vmatpush1.bf16.msra.mxu0 0
      %1156 = vmatprep.subr.bf16.mxu0 0
      %1157 = vmatpush1.bf16.msra.mxu0 0
      %1158 = vmatprep.subr.bf16.mxu0 0
      %1159 = vmatpush1.bf16.msra.mxu0 0
      %1160 = vmatprep.subr.bf16.mxu0 0
      %1161 = vmatpush1.bf16.msra.mxu0 0
      %1162 = vmatprep.subr.bf16.mxu0 0
      %1163 = vmatpush1.bf16.msra.mxu0 0
      %1164 = vmatprep.subr.bf16.mxu0 0
      %1165 = vmatpush1.bf16.msra.mxu0 0
      %1166 = vmatprep.subr.bf16.mxu0 0
      %1167 = vmatpush1.bf16.msra.mxu0 0
      %1168 = vmatprep.subr.bf16.mxu0 0
      %1169 = vmatpush1.bf16.msra.mxu0 0
      %1170 = vmatprep.subr.bf16.mxu0 0
      %1171 = vmatpush1.bf16.msra.mxu0 0
      %1172 = vmatprep.subr.bf16.mxu0 0
      %1173 = vmatpush1.bf16.msra.mxu0 0
      %1174 = vmatprep.subr.bf16.mxu0 0
      %1175 = vmatpush1.bf16.msra.mxu0 0
      %1176 = vmatprep.subr.bf16.mxu0 0
      %1177 = vmatpush1.bf16.msra.mxu0 0
      %1178 = vmatprep.subr.bf16.mxu0 0
      %1179 = vmatpush1.bf16.msra.mxu0 0
      %1180 = vmatprep.mubr.bf16.mxu0 0
      %1181 = vmatmul.mubr.bf16.gmra.mrb[0].mxu0 %v1140
      %v1182 = vpop.f32.mrb[0].mxu0
      %v1183 = vadd.f32 0.0, %v1182
      %v1184 = vpop.f32.mrb[0].mxu0
      %v1185 = vpop.f32.mrb[0].mxu0
      %v1186 = vadd.f32 0.0, %v1185
      %v1187 = vpop.f32.mrb[0].mxu0
      %1188 = vmatprep.mubr.bf16.mxu0 0
      %1189 = vmatmul.mubr.bf16.gmra.mrb[0].mxu0 %v1143
      %v1190 = vpop.f32.mrb[0].mxu0
      %v1191 = vadd.f32 0.0, %v1190
      %v1192 = vpop.f32.mrb[0].mxu0
      %v1193 = vpop.f32.mrb[0].mxu0
      %v1194 = vadd.f32 0.0, %v1193
      %v1195 = vpop.f32.mrb[0].mxu0
      %1196 = vdwg.mxu0
      %v1197 = vadd.f32 %v1115, %v1183
      %v1198 = vadd.f32 %v1116, %v1186
      %v1199 = vadd.f32 %v1117, %v1191
      %v1200 = vadd.f32 %v1118, %v1194
      %s1201 = sadd.s32 %s1120, 18
      %s1202 = smul.addr %s1201, 4
      %s1203 = scalar_lea.vmem %s235, %s1202
      %v1204 = vld [vmem:[%s1203] sm:$0xf]
      %v1205 = vld [vmem:[%s1203 + $0x8] sm:$0xf]
      %v1206 = vld [vmem:[%s1203 + $0x10] sm:$0xf]
      %v1207 = vld [vmem:[%s1203 + $0x18] sm:$0xf]
      %s1208 = scalar_lea.vmem %s1, 18
      %v1209 = vld [vmem:[%s1208] sm:$0x3]
      %v1214 = vunpack.c.l.b16 %v1204
      %v1215 = vunpack.c.l.b16 %v1205
      %v1216 = vunpack.c.l.b16 %v1206
      %v1217 = vunpack.c.l.b16 %v1207
      %v1218 = vpack.c.b16 %v1215, %v1214
      %v1219 = vpack.c.b16 %v1217, %v1216
      %v1221 = vsel %vm290, %v1218, 0
      %v1224 = vsel %vm290, %v1219, 0
      %v1227 = vsel %vm297, %v1209, 0
      %1229 = vmatprep.subr.bf16.mxu0 0
      %1230 = vmatpush1.bf16.msra.mxu0 %v1227
      %1231 = vmatprep.subr.bf16.mxu0 0
      %1232 = vmatpush1.bf16.msra.mxu0 0
      %1233 = vmatprep.subr.bf16.mxu0 0
      %1234 = vmatpush1.bf16.msra.mxu0 0
      %1235 = vmatprep.subr.bf16.mxu0 0
      %1236 = vmatpush1.bf16.msra.mxu0 0
      %1237 = vmatprep.subr.bf16.mxu0 0
      %1238 = vmatpush1.bf16.msra.mxu0 0
      %1239 = vmatprep.subr.bf16.mxu0 0
      %1240 = vmatpush1.bf16.msra.mxu0 0
      %1241 = vmatprep.subr.bf16.mxu0 0
      %1242 = vmatpush1.bf16.msra.mxu0 0
      %1243 = vmatprep.subr.bf16.mxu0 0
      %1244 = vmatpush1.bf16.msra.mxu0 0
      %1245 = vmatprep.subr.bf16.mxu0 0
      %1246 = vmatpush1.bf16.msra.mxu0 0
      %1247 = vmatprep.subr.bf16.mxu0 0
      %1248 = vmatpush1.bf16.msra.mxu0 0
      %1249 = vmatprep.subr.bf16.mxu0 0
      %1250 = vmatpush1.bf16.msra.mxu0 0
      %1251 = vmatprep.subr.bf16.mxu0 0
      %1252 = vmatpush1.bf16.msra.mxu0 0
      %1253 = vmatprep.subr.bf16.mxu0 0
      %1254 = vmatpush1.bf16.msra.mxu0 0
      %1255 = vmatprep.subr.bf16.mxu0 0
      %1256 = vmatpush1.bf16.msra.mxu0 0
      %1257 = vmatprep.subr.bf16.mxu0 0
      %1258 = vmatpush1.bf16.msra.mxu0 0
      %1259 = vmatprep.subr.bf16.mxu0 0
      %1260 = vmatpush1.bf16.msra.mxu0 0
      %1261 = vmatprep.mubr.bf16.mxu0 0
      %1262 = vmatmul.mubr.bf16.gmra.mrb[0].mxu0 %v1221
      %v1263 = vpop.f32.mrb[0].mxu0
      %v1264 = vadd.f32 0.0, %v1263
      %v1265 = vpop.f32.mrb[0].mxu0
      %v1266 = vpop.f32.mrb[0].mxu0
      %v1267 = vadd.f32 0.0, %v1266
      %v1268 = vpop.f32.mrb[0].mxu0
      %1269 = vmatprep.mubr.bf16.mxu0 0
      %1270 = vmatmul.mubr.bf16.gmra.mrb[0].mxu0 %v1224
      %v1271 = vpop.f32.mrb[0].mxu0
      %v1272 = vadd.f32 0.0, %v1271
      %v1273 = vpop.f32.mrb[0].mxu0
      %v1274 = vpop.f32.mrb[0].mxu0
      %v1275 = vadd.f32 0.0, %v1274
      %v1276 = vpop.f32.mrb[0].mxu0
      %1277 = vdwg.mxu0
      %v1278 = vadd.f32 %v1197, %v1264
      %v1279 = vadd.f32 %v1198, %v1267
      %v1280 = vadd.f32 %v1199, %v1272
      %v1281 = vadd.f32 %v1200, %v1275
      %v1282 = vld [vmem:[%s1122] sm:$0xf]
      %v1283 = vld [vmem:[%s1122 + $0x4] sm:$0x1]
      %v1284 = vld [vmem:[%s1122 + $0x8] sm:$0xf]
      %v1285 = vld [vmem:[%s1122 + $0xc] sm:$0x1]
      %v1286 = vld [vmem:[%s1122 + $0x10] sm:$0xf]
      %v1287 = vld [vmem:[%s1122 + $0x14] sm:$0x1]
      %v1288 = vld [vmem:[%s1122 + $0x18] sm:$0xf]
      %v1289 = vld [vmem:[%s1122 + $0x1c] sm:$0x1]
      %v1291 = vshrl.u32 %v1282, 16
      %v1293 = vrot.slane %v1291, 4
      %v1294 = vshll.u32 %v1282, 16
      %v1296 = vrot.slane %v1294, 5
      %v1297 = vor.u32 %v1293, %v1296
      %v1298 = vrot.slane %v1297, 4
      %v1300 = vshll.u32 %v1283, 16
      %v1302 = vrot.slane %v1300, 5
      %v1303 = vsel %vm428, %v1298, %v1302
      %v1305 = vshrl.u32 %v1284, 16
      %v1307 = vrot.slane %v1305, 4
      %v1308 = vshll.u32 %v1284, 16
      %v1310 = vrot.slane %v1308, 5
      %v1311 = vor.u32 %v1307, %v1310
      %v1312 = vrot.slane %v1311, 4
      %v1314 = vshll.u32 %v1285, 16
      %v1316 = vrot.slane %v1314, 5
      %v1317 = vsel %vm428, %v1312, %v1316
      %v1319 = vshrl.u32 %v1286, 16
      %v1321 = vrot.slane %v1319, 4
      %v1322 = vshll.u32 %v1286, 16
      %v1324 = vrot.slane %v1322, 5
      %v1325 = vor.u32 %v1321, %v1324
      %v1326 = vrot.slane %v1325, 4
      %v1328 = vshll.u32 %v1287, 16
      %v1330 = vrot.slane %v1328, 5
      %v1331 = vsel %vm428, %v1326, %v1330
      %v1333 = vshrl.u32 %v1288, 16
      %v1335 = vrot.slane %v1333, 4
      %v1336 = vshll.u32 %v1288, 16
      %v1338 = vrot.slane %v1336, 5
      %v1339 = vor.u32 %v1335, %v1338
      %v1340 = vrot.slane %v1339, 4
      %v1342 = vshll.u32 %v1289, 16
      %v1344 = vrot.slane %v1342, 5
      %v1345 = vsel %vm428, %v1340, %v1344
      %s1346 = scalar_lea.vmem %s1, 20
      %v1347 = vld [vmem:[%s1346] sm:$0x3]
      %v1348 = vunpack.c.l.b16 %v1303
      %v1349 = vunpack.c.l.b16 %v1317
      %v1350 = vunpack.c.l.b16 %v1331
      %v1351 = vunpack.c.l.b16 %v1345
      %v1352 = vpack.c.b16 %v1349, %v1348
      %v1353 = vpack.c.b16 %v1351, %v1350
      %v1355 = vsel %vm290, %v1352, 0
      %v1358 = vsel %vm290, %v1353, 0
      %v1361 = vsel %vm297, %v1347, 0
      %1363 = vmatprep.subr.bf16.mxu0 0
      %1364 = vmatpush1.bf16.msra.mxu0 %v1361
      %1365 = vmatprep.subr.bf16.mxu0 0
      %1366 = vmatpush1.bf16.msra.mxu0 0
      %1367 = vmatprep.subr.bf16.mxu0 0
      %1368 = vmatpush1.bf16.msra.mxu0 0
      %1369 = vmatprep.subr.bf16.mxu0 0
      %1370 = vmatpush1.bf16.msra.mxu0 0
      %1371 = vmatprep.subr.bf16.mxu0 0
      %1372 = vmatpush1.bf16.msra.mxu0 0
      %1373 = vmatprep.subr.bf16.mxu0 0
      %1374 = vmatpush1.bf16.msra.mxu0 0
      %1375 = vmatprep.subr.bf16.mxu0 0
      %1376 = vmatpush1.bf16.msra.mxu0 0
      %1377 = vmatprep.subr.bf16.mxu0 0
      %1378 = vmatpush1.bf16.msra.mxu0 0
      %1379 = vmatprep.subr.bf16.mxu0 0
      %1380 = vmatpush1.bf16.msra.mxu0 0
      %1381 = vmatprep.subr.bf16.mxu0 0
      %1382 = vmatpush1.bf16.msra.mxu0 0
      %1383 = vmatprep.subr.bf16.mxu0 0
      %1384 = vmatpush1.bf16.msra.mxu0 0
      %1385 = vmatprep.subr.bf16.mxu0 0
      %1386 = vmatpush1.bf16.msra.mxu0 0
      %1387 = vmatprep.subr.bf16.mxu0 0
      %1388 = vmatpush1.bf16.msra.mxu0 0
      %1389 = vmatprep.subr.bf16.mxu0 0
      %1390 = vmatpush1.bf16.msra.mxu0 0
      %1391 = vmatprep.subr.bf16.mxu0 0
      %1392 = vmatpush1.bf16.msra.mxu0 0
      %1393 = vmatprep.subr.bf16.mxu0 0
      %1394 = vmatpush1.bf16.msra.mxu0 0
      %1395 = vmatprep.mubr.bf16.mxu0 0
      %1396 = vmatmul.mubr.bf16.gmra.mrb[0].mxu0 %v1355
      %v1397 = vpop.f32.mrb[0].mxu0
      %v1398 = vadd.f32 0.0, %v1397
      %v1399 = vpop.f32.mrb[0].mxu0
      %v1400 = vpop.f32.mrb[0].mxu0
      %v1401 = vadd.f32 0.0, %v1400
      %v1402 = vpop.f32.mrb[0].mxu0
      %1403 = vmatprep.mubr.bf16.mxu0 0
      %1404 = vmatmul.mubr.bf16.gmra.mrb[0].mxu0 %v1358
      %v1405 = vpop.f32.mrb[0].mxu0
      %v1406 = vadd.f32 0.0, %v1405
      %v1407 = vpop.f32.mrb[0].mxu0
      %v1408 = vpop.f32.mrb[0].mxu0
      %v1409 = vadd.f32 0.0, %v1408
      %v1410 = vpop.f32.mrb[0].mxu0
      %1411 = vdwg.mxu0
      %v1412 = vadd.f32 %v1278, %v1398
      %v1413 = vadd.f32 %v1279, %v1401
      %v1414 = vadd.f32 %v1280, %v1406
      %v1415 = vadd.f32 %v1281, %v1409
      %v1416 = vld [vmem:[%s1203] sm:$0xf]
      %v1417 = vld [vmem:[%s1203 + $0x4] sm:$0x1]
      %v1418 = vld [vmem:[%s1203 + $0x8] sm:$0xf]
      %v1419 = vld [vmem:[%s1203 + $0xc] sm:$0x1]
      %v1420 = vld [vmem:[%s1203 + $0x10] sm:$0xf]
      %v1421 = vld [vmem:[%s1203 + $0x14] sm:$0x1]
      %v1422 = vld [vmem:[%s1203 + $0x18] sm:$0xf]
      %v1423 = vld [vmem:[%s1203 + $0x1c] sm:$0x1]
      %v1425 = vshrl.u32 %v1416, 16
      %v1427 = vrot.slane %v1425, 4
      %v1428 = vshll.u32 %v1416, 16
      %v1430 = vrot.slane %v1428, 5
      %v1431 = vor.u32 %v1427, %v1430
      %v1432 = vrot.slane %v1431, 4
      %v1434 = vshll.u32 %v1417, 16
      %v1436 = vrot.slane %v1434, 5
      %v1437 = vsel %vm428, %v1432, %v1436
      %v1439 = vshrl.u32 %v1418, 16
      %v1441 = vrot.slane %v1439, 4
      %v1442 = vshll.u32 %v1418, 16
      %v1444 = vrot.slane %v1442, 5
      %v1445 = vor.u32 %v1441, %v1444
      %v1446 = vrot.slane %v1445, 4
      %v1448 = vshll.u32 %v1419, 16
      %v1450 = vrot.slane %v1448, 5
      %v1451 = vsel %vm428, %v1446, %v1450
      %v1453 = vshrl.u32 %v1420, 16
      %v1455 = vrot.slane %v1453, 4
      %v1456 = vshll.u32 %v1420, 16
      %v1458 = vrot.slane %v1456, 5
      %v1459 = vor.u32 %v1455, %v1458
      %v1460 = vrot.slane %v1459, 4
      %v1462 = vshll.u32 %v1421, 16
      %v1464 = vrot.slane %v1462, 5
      %v1465 = vsel %vm428, %v1460, %v1464
      %v1467 = vshrl.u32 %v1422, 16
      %v1469 = vrot.slane %v1467, 4
      %v1470 = vshll.u32 %v1422, 16
      %v1472 = vrot.slane %v1470, 5
      %v1473 = vor.u32 %v1469, %v1472
      %v1474 = vrot.slane %v1473, 4
      %v1476 = vshll.u32 %v1423, 16
      %v1478 = vrot.slane %v1476, 5
      %v1479 = vsel %vm428, %v1474, %v1478
      %s1480 = scalar_lea.vmem %s1, 22
      %v1481 = vld [vmem:[%s1480] sm:$0x3]
      %v1482 = vunpack.c.l.b16 %v1437
      %v1483 = vunpack.c.l.b16 %v1451
      %v1484 = vunpack.c.l.b16 %v1465
      %v1485 = vunpack.c.l.b16 %v1479
      %v1486 = vpack.c.b16 %v1483, %v1482
      %v1487 = vpack.c.b16 %v1485, %v1484
      %v1489 = vsel %vm290, %v1486, 0
      %v1492 = vsel %vm290, %v1487, 0
      %v1495 = vsel %vm297, %v1481, 0
      %1497 = vmatprep.subr.bf16.mxu0 0
      %1498 = vmatpush1.bf16.msra.mxu0 %v1495
      %1499 = vmatprep.subr.bf16.mxu0 0
      %1500 = vmatpush1.bf16.msra.mxu0 0
      %1501 = vmatprep.subr.bf16.mxu0 0
      %1502 = vmatpush1.bf16.msra.mxu0 0
      %1503 = vmatprep.subr.bf16.mxu0 0
      %1504 = vmatpush1.bf16.msra.mxu0 0
      %1505 = vmatprep.subr.bf16.mxu0 0
      %1506 = vmatpush1.bf16.msra.mxu0 0
      %1507 = vmatprep.subr.bf16.mxu0 0
      %1508 = vmatpush1.bf16.msra.mxu0 0
      %1509 = vmatprep.subr.bf16.mxu0 0
      %1510 = vmatpush1.bf16.msra.mxu0 0
      %1511 = vmatprep.subr.bf16.mxu0 0
      %1512 = vmatpush1.bf16.msra.mxu0 0
      %1513 = vmatprep.subr.bf16.mxu0 0
      %1514 = vmatpush1.bf16.msra.mxu0 0
      %1515 = vmatprep.subr.bf16.mxu0 0
      %1516 = vmatpush1.bf16.msra.mxu0 0
      %1517 = vmatprep.subr.bf16.mxu0 0
      %1518 = vmatpush1.bf16.msra.mxu0 0
      %1519 = vmatprep.subr.bf16.mxu0 0
      %1520 = vmatpush1.bf16.msra.mxu0 0
      %1521 = vmatprep.subr.bf16.mxu0 0
      %1522 = vmatpush1.bf16.msra.mxu0 0
      %1523 = vmatprep.subr.bf16.mxu0 0
      %1524 = vmatpush1.bf16.msra.mxu0 0
      %1525 = vmatprep.subr.bf16.mxu0 0
      %1526 = vmatpush1.bf16.msra.mxu0 0
      %1527 = vmatprep.subr.bf16.mxu0 0
      %1528 = vmatpush1.bf16.msra.mxu0 0
      %1529 = vmatprep.mubr.bf16.mxu0 0
      %1530 = vmatmul.mubr.bf16.gmra.mrb[0].mxu0 %v1489
      %v1531 = vpop.f32.mrb[0].mxu0
      %v1532 = vadd.f32 0.0, %v1531
      %v1533 = vpop.f32.mrb[0].mxu0
      %v1534 = vpop.f32.mrb[0].mxu0
      %v1535 = vadd.f32 0.0, %v1534
      %v1536 = vpop.f32.mrb[0].mxu0
      %1537 = vmatprep.mubr.bf16.mxu0 0
      %1538 = vmatmul.mubr.bf16.gmra.mrb[0].mxu0 %v1492
      %v1539 = vpop.f32.mrb[0].mxu0
      %v1540 = vadd.f32 0.0, %v1539
      %v1541 = vpop.f32.mrb[0].mxu0
      %v1542 = vpop.f32.mrb[0].mxu0
      %v1543 = vadd.f32 0.0, %v1542
      %v1544 = vpop.f32.mrb[0].mxu0
      %1545 = vdwg.mxu0
      %v1546 = vadd.f32 %v1412, %v1532
      %v1547 = vadd.f32 %v1413, %v1535
      %v1548 = vadd.f32 %v1414, %v1540
      %v1549 = vadd.f32 %v1415, %v1543
      %s1550 = sadd.s32 %s1120, 36
      %s1551 = smul.addr %s1550, 4
      %s1552 = scalar_lea.vmem %s235, %s1551
      %v1553 = vld [vmem:[%s1552] sm:$0xf]
      %v1554 = vld [vmem:[%s1552 + $0x8] sm:$0xf]
      %v1555 = vld [vmem:[%s1552 + $0x10] sm:$0xf]
      %v1556 = vld [vmem:[%s1552 + $0x18] sm:$0xf]
      %s1557 = scalar_lea.vmem %s1, 24
      %v1558 = vld [vmem:[%s1557] sm:$0x3]
      %v1563 = vunpack.c.l.b16 %v1553
      %v1564 = vunpack.c.l.b16 %v1554
      %v1565 = vunpack.c.l.b16 %v1555
      %v1566 = vunpack.c.l.b16 %v1556
      %v1567 = vpack.c.b16 %v1564, %v1563
      %v1568 = vpack.c.b16 %v1566, %v1565
      %v1570 = vsel %vm290, %v1567, 0
      %v1573 = vsel %vm290, %v1568, 0
      %v1576 = vsel %vm297, %v1558, 0
      %1578 = vmatprep.subr.bf16.mxu0 0
      %1579 = vmatpush1.bf16.msra.mxu0 %v1576
      %1580 = vmatprep.subr.bf16.mxu0 0
      %1581 = vmatpush1.bf16.msra.mxu0 0
      %1582 = vmatprep.subr.bf16.mxu0 0
      %1583 = vmatpush1.bf16.msra.mxu0 0
      %1584 = vmatprep.subr.bf16.mxu0 0
      %1585 = vmatpush1.bf16.msra.mxu0 0
      %1586 = vmatprep.subr.bf16.mxu0 0
      %1587 = vmatpush1.bf16.msra.mxu0 0
      %1588 = vmatprep.subr.bf16.mxu0 0
      %1589 = vmatpush1.bf16.msra.mxu0 0
      %1590 = vmatprep.subr.bf16.mxu0 0
      %1591 = vmatpush1.bf16.msra.mxu0 0
      %1592 = vmatprep.subr.bf16.mxu0 0
      %1593 = vmatpush1.bf16.msra.mxu0 0
      %1594 = vmatprep.subr.bf16.mxu0 0
      %1595 = vmatpush1.bf16.msra.mxu0 0
      %1596 = vmatprep.subr.bf16.mxu0 0
      %1597 = vmatpush1.bf16.msra.mxu0 0
      %1598 = vmatprep.subr.bf16.mxu0 0
      %1599 = vmatpush1.bf16.msra.mxu0 0
      %1600 = vmatprep.subr.bf16.mxu0 0
      %1601 = vmatpush1.bf16.msra.mxu0 0
      %1602 = vmatprep.subr.bf16.mxu0 0
      %1603 = vmatpush1.bf16.msra.mxu0 0
      %1604 = vmatprep.subr.bf16.mxu0 0
      %1605 = vmatpush1.bf16.msra.mxu0 0
      %1606 = vmatprep.subr.bf16.mxu0 0
      %1607 = vmatpush1.bf16.msra.mxu0 0
      %1608 = vmatprep.subr.bf16.mxu0 0
      %1609 = vmatpush1.bf16.msra.mxu0 0
      %1610 = vmatprep.mubr.bf16.mxu0 0
      %1611 = vmatmul.mubr.bf16.gmra.mrb[0].mxu0 %v1570
      %v1612 = vpop.f32.mrb[0].mxu0
      %v1613 = vadd.f32 0.0, %v1612
      %v1614 = vpop.f32.mrb[0].mxu0
      %v1615 = vpop.f32.mrb[0].mxu0
      %v1616 = vadd.f32 0.0, %v1615
      %v1617 = vpop.f32.mrb[0].mxu0
      %1618 = vmatprep.mubr.bf16.mxu0 0
      %1619 = vmatmul.mubr.bf16.gmra.mrb[0].mxu0 %v1573
      %v1620 = vpop.f32.mrb[0].mxu0
      %v1621 = vadd.f32 0.0, %v1620
      %v1622 = vpop.f32.mrb[0].mxu0
      %v1623 = vpop.f32.mrb[0].mxu0
      %v1624 = vadd.f32 0.0, %v1623
      %v1625 = vpop.f32.mrb[0].mxu0
      %1626 = vdwg.mxu0
      %v1627 = vadd.f32 %v1546, %v1613
      %v1628 = vadd.f32 %v1547, %v1616
      %v1629 = vadd.f32 %v1548, %v1621
      %v1630 = vadd.f32 %v1549, %v1624
      %s1631 = sadd.s32 %s1120, 54
      %s1632 = smul.addr %s1631, 4
      %s1633 = scalar_lea.vmem %s235, %s1632
      %v1634 = vld [vmem:[%s1633] sm:$0xf]
      %v1635 = vld [vmem:[%s1633 + $0x8] sm:$0xf]
      %v1636 = vld [vmem:[%s1633 + $0x10] sm:$0xf]
      %v1637 = vld [vmem:[%s1633 + $0x18] sm:$0xf]
      %s1638 = scalar_lea.vmem %s1, 26
      %v1639 = vld [vmem:[%s1638] sm:$0x3]
      %v1644 = vunpack.c.l.b16 %v1634
      %v1645 = vunpack.c.l.b16 %v1635
      %v1646 = vunpack.c.l.b16 %v1636
      %v1647 = vunpack.c.l.b16 %v1637
      %v1648 = vpack.c.b16 %v1645, %v1644
      %v1649 = vpack.c.b16 %v1647, %v1646
      %v1651 = vsel %vm290, %v1648, 0
      %v1654 = vsel %vm290, %v1649, 0
      %v1657 = vsel %vm297, %v1639, 0
      %1659 = vmatprep.subr.bf16.mxu0 0
      %1660 = vmatpush1.bf16.msra.mxu0 %v1657
      %1661 = vmatprep.subr.bf16.mxu0 0
      %1662 = vmatpush1.bf16.msra.mxu0 0
      %1663 = vmatprep.subr.bf16.mxu0 0
      %1664 = vmatpush1.bf16.msra.mxu0 0
      %1665 = vmatprep.subr.bf16.mxu0 0
      %1666 = vmatpush1.bf16.msra.mxu0 0
      %1667 = vmatprep.subr.bf16.mxu0 0
      %1668 = vmatpush1.bf16.msra.mxu0 0
      %1669 = vmatprep.subr.bf16.mxu0 0
      %1670 = vmatpush1.bf16.msra.mxu0 0
      %1671 = vmatprep.subr.bf16.mxu0 0
      %1672 = vmatpush1.bf16.msra.mxu0 0
      %1673 = vmatprep.subr.bf16.mxu0 0
      %1674 = vmatpush1.bf16.msra.mxu0 0
      %1675 = vmatprep.subr.bf16.mxu0 0
      %1676 = vmatpush1.bf16.msra.mxu0 0
      %1677 = vmatprep.subr.bf16.mxu0 0
      %1678 = vmatpush1.bf16.msra.mxu0 0
      %1679 = vmatprep.subr.bf16.mxu0 0
      %1680 = vmatpush1.bf16.msra.mxu0 0
      %1681 = vmatprep.subr.bf16.mxu0 0
      %1682 = vmatpush1.bf16.msra.mxu0 0
      %1683 = vmatprep.subr.bf16.mxu0 0
      %1684 = vmatpush1.bf16.msra.mxu0 0
      %1685 = vmatprep.subr.bf16.mxu0 0
      %1686 = vmatpush1.bf16.msra.mxu0 0
      %1687 = vmatprep.subr.bf16.mxu0 0
      %1688 = vmatpush1.bf16.msra.mxu0 0
      %1689 = vmatprep.subr.bf16.mxu0 0
      %1690 = vmatpush1.bf16.msra.mxu0 0
      %1691 = vmatprep.mubr.bf16.mxu0 0
      %1692 = vmatmul.mubr.bf16.gmra.mrb[0].mxu0 %v1651
      %v1693 = vpop.f32.mrb[0].mxu0
      %v1694 = vadd.f32 0.0, %v1693
      %v1695 = vpop.f32.mrb[0].mxu0
      %v1696 = vpop.f32.mrb[0].mxu0
      %v1697 = vadd.f32 0.0, %v1696
      %v1698 = vpop.f32.mrb[0].mxu0
      %1699 = vmatprep.mubr.bf16.mxu0 0
      %1700 = vmatmul.mubr.bf16.gmra.mrb[0].mxu0 %v1654
      %v1701 = vpop.f32.mrb[0].mxu0
      %v1702 = vadd.f32 0.0, %v1701
      %v1703 = vpop.f32.mrb[0].mxu0
      %v1704 = vpop.f32.mrb[0].mxu0
      %v1705 = vadd.f32 0.0, %v1704
      %v1706 = vpop.f32.mrb[0].mxu0
      %1707 = vdwg.mxu0
      %v1708 = vadd.f32 %v1627, %v1694
      %v1709 = vadd.f32 %v1628, %v1697
      %v1710 = vadd.f32 %v1629, %v1702
      %v1711 = vadd.f32 %v1630, %v1705
      %v1712 = vld [vmem:[%s1552] sm:$0xf]
      %v1713 = vld [vmem:[%s1552 + $0x4] sm:$0x1]
      %v1714 = vld [vmem:[%s1552 + $0x8] sm:$0xf]
      %v1715 = vld [vmem:[%s1552 + $0xc] sm:$0x1]
      %v1716 = vld [vmem:[%s1552 + $0x10] sm:$0xf]
      %v1717 = vld [vmem:[%s1552 + $0x14] sm:$0x1]
      %v1718 = vld [vmem:[%s1552 + $0x18] sm:$0xf]
      %v1719 = vld [vmem:[%s1552 + $0x1c] sm:$0x1]
      %v1721 = vshrl.u32 %v1712, 16
      %v1723 = vrot.slane %v1721, 4
      %v1724 = vshll.u32 %v1712, 16
      %v1726 = vrot.slane %v1724, 5
      %v1727 = vor.u32 %v1723, %v1726
      %v1728 = vrot.slane %v1727, 4
      %v1730 = vshll.u32 %v1713, 16
      %v1732 = vrot.slane %v1730, 5
      %v1733 = vsel %vm428, %v1728, %v1732
      %v1735 = vshrl.u32 %v1714, 16
      %v1737 = vrot.slane %v1735, 4
      %v1738 = vshll.u32 %v1714, 16
      %v1740 = vrot.slane %v1738, 5
      %v1741 = vor.u32 %v1737, %v1740
      %v1742 = vrot.slane %v1741, 4
      %v1744 = vshll.u32 %v1715, 16
      %v1746 = vrot.slane %v1744, 5
      %v1747 = vsel %vm428, %v1742, %v1746
      %v1749 = vshrl.u32 %v1716, 16
      %v1751 = vrot.slane %v1749, 4
      %v1752 = vshll.u32 %v1716, 16
      %v1754 = vrot.slane %v1752, 5
      %v1755 = vor.u32 %v1751, %v1754
      %v1756 = vrot.slane %v1755, 4
      %v1758 = vshll.u32 %v1717, 16
      %v1760 = vrot.slane %v1758, 5
      %v1761 = vsel %vm428, %v1756, %v1760
      %v1763 = vshrl.u32 %v1718, 16
      %v1765 = vrot.slane %v1763, 4
      %v1766 = vshll.u32 %v1718, 16
      %v1768 = vrot.slane %v1766, 5
      %v1769 = vor.u32 %v1765, %v1768
      %v1770 = vrot.slane %v1769, 4
      %v1772 = vshll.u32 %v1719, 16
      %v1774 = vrot.slane %v1772, 5
      %v1775 = vsel %vm428, %v1770, %v1774
      %s1776 = scalar_lea.vmem %s1, 28
      %v1777 = vld [vmem:[%s1776] sm:$0x3]
      %v1778 = vunpack.c.l.b16 %v1733
      %v1779 = vunpack.c.l.b16 %v1747
      %v1780 = vunpack.c.l.b16 %v1761
      %v1781 = vunpack.c.l.b16 %v1775
      %v1782 = vpack.c.b16 %v1779, %v1778
      %v1783 = vpack.c.b16 %v1781, %v1780
      %v1785 = vsel %vm290, %v1782, 0
      %v1788 = vsel %vm290, %v1783, 0
      %v1791 = vsel %vm297, %v1777, 0
      %1793 = vmatprep.subr.bf16.mxu0 0
      %1794 = vmatpush1.bf16.msra.mxu0 %v1791
      %1795 = vmatprep.subr.bf16.mxu0 0
      %1796 = vmatpush1.bf16.msra.mxu0 0
      %1797 = vmatprep.subr.bf16.mxu0 0
      %1798 = vmatpush1.bf16.msra.mxu0 0
      %1799 = vmatprep.subr.bf16.mxu0 0
      %1800 = vmatpush1.bf16.msra.mxu0 0
      %1801 = vmatprep.subr.bf16.mxu0 0
      %1802 = vmatpush1.bf16.msra.mxu0 0
      %1803 = vmatprep.subr.bf16.mxu0 0
      %1804 = vmatpush1.bf16.msra.mxu0 0
      %1805 = vmatprep.subr.bf16.mxu0 0
      %1806 = vmatpush1.bf16.msra.mxu0 0
      %1807 = vmatprep.subr.bf16.mxu0 0
      %1808 = vmatpush1.bf16.msra.mxu0 0
      %1809 = vmatprep.subr.bf16.mxu0 0
      %1810 = vmatpush1.bf16.msra.mxu0 0
      %1811 = vmatprep.subr.bf16.mxu0 0
      %1812 = vmatpush1.bf16.msra.mxu0 0
      %1813 = vmatprep.subr.bf16.mxu0 0
      %1814 = vmatpush1.bf16.msra.mxu0 0
      %1815 = vmatprep.subr.bf16.mxu0 0
      %1816 = vmatpush1.bf16.msra.mxu0 0
      %1817 = vmatprep.subr.bf16.mxu0 0
      %1818 = vmatpush1.bf16.msra.mxu0 0
      %1819 = vmatprep.subr.bf16.mxu0 0
      %1820 = vmatpush1.bf16.msra.mxu0 0
      %1821 = vmatprep.subr.bf16.mxu0 0
      %1822 = vmatpush1.bf16.msra.mxu0 0
      %1823 = vmatprep.subr.bf16.mxu0 0
      %1824 = vmatpush1.bf16.msra.mxu0 0
      %1825 = vmatprep.mubr.bf16.mxu0 0
      %1826 = vmatmul.mubr.bf16.gmra.mrb[0].mxu0 %v1785
      %v1827 = vpop.f32.mrb[0].mxu0
      %v1828 = vadd.f32 0.0, %v1827
      %v1829 = vpop.f32.mrb[0].mxu0
      %v1830 = vpop.f32.mrb[0].mxu0
      %v1831 = vadd.f32 0.0, %v1830
      %v1832 = vpop.f32.mrb[0].mxu0
      %1833 = vmatprep.mubr.bf16.mxu0 0
      %1834 = vmatmul.mubr.bf16.gmra.mrb[0].mxu0 %v1788
      %v1835 = vpop.f32.mrb[0].mxu0
      %v1836 = vadd.f32 0.0, %v1835
      %v1837 = vpop.f32.mrb[0].mxu0
      %v1838 = vpop.f32.mrb[0].mxu0
      %v1839 = vadd.f32 0.0, %v1838
      %v1840 = vpop.f32.mrb[0].mxu0
      %1841 = vdwg.mxu0
      %v1842 = vadd.f32 %v1708, %v1828
      %v1843 = vadd.f32 %v1709, %v1831
      %v1844 = vadd.f32 %v1710, %v1836
      %v1845 = vadd.f32 %v1711, %v1839
      %v1846 = vld [vmem:[%s1633] sm:$0xf]
      %v1847 = vld [vmem:[%s1633 + $0x4] sm:$0x1]
      %v1848 = vld [vmem:[%s1633 + $0x8] sm:$0xf]
      %v1849 = vld [vmem:[%s1633 + $0xc] sm:$0x1]
      %v1850 = vld [vmem:[%s1633 + $0x10] sm:$0xf]
      %v1851 = vld [vmem:[%s1633 + $0x14] sm:$0x1]
      %v1852 = vld [vmem:[%s1633 + $0x18] sm:$0xf]
      %v1853 = vld [vmem:[%s1633 + $0x1c] sm:$0x1]
      %v1855 = vshrl.u32 %v1846, 16
      %v1857 = vrot.slane %v1855, 4
      %v1858 = vshll.u32 %v1846, 16
      %v1860 = vrot.slane %v1858, 5
      %v1861 = vor.u32 %v1857, %v1860
      %v1862 = vrot.slane %v1861, 4
      %v1864 = vshll.u32 %v1847, 16
      %v1866 = vrot.slane %v1864, 5
      %v1867 = vsel %vm428, %v1862, %v1866
      %v1869 = vshrl.u32 %v1848, 16
      %v1871 = vrot.slane %v1869, 4
      %v1872 = vshll.u32 %v1848, 16
      %v1874 = vrot.slane %v1872, 5
      %v1875 = vor.u32 %v1871, %v1874
      %v1876 = vrot.slane %v1875, 4
      %v1878 = vshll.u32 %v1849, 16
      %v1880 = vrot.slane %v1878, 5
      %v1881 = vsel %vm428, %v1876, %v1880
      %v1883 = vshrl.u32 %v1850, 16
      %v1885 = vrot.slane %v1883, 4
      %v1886 = vshll.u32 %v1850, 16
      %v1888 = vrot.slane %v1886, 5
      %v1889 = vor.u32 %v1885, %v1888
      %v1890 = vrot.slane %v1889, 4
      %v1892 = vshll.u32 %v1851, 16
      %v1894 = vrot.slane %v1892, 5
      %v1895 = vsel %vm428, %v1890, %v1894
      %v1897 = vshrl.u32 %v1852, 16
      %v1899 = vrot.slane %v1897, 4
      %v1900 = vshll.u32 %v1852, 16
      %v1902 = vrot.slane %v1900, 5
      %v1903 = vor.u32 %v1899, %v1902
      %v1904 = vrot.slane %v1903, 4
      %v1906 = vshll.u32 %v1853, 16
      %v1908 = vrot.slane %v1906, 5
      %v1909 = vsel %vm428, %v1904, %v1908
      %s1910 = scalar_lea.vmem %s1, 30
      %v1911 = vld [vmem:[%s1910] sm:$0x3]
      %v1912 = vunpack.c.l.b16 %v1867
      %v1913 = vunpack.c.l.b16 %v1881
      %v1914 = vunpack.c.l.b16 %v1895
      %v1915 = vunpack.c.l.b16 %v1909
      %v1916 = vpack.c.b16 %v1913, %v1912
      %v1917 = vpack.c.b16 %v1915, %v1914
      %v1919 = vsel %vm290, %v1916, 0
      %v1922 = vsel %vm290, %v1917, 0
      %v1925 = vsel %vm297, %v1911, 0
      %1927 = vmatprep.subr.bf16.mxu0 0
      %1928 = vmatpush1.bf16.msra.mxu0 %v1925
      %1929 = vmatprep.subr.bf16.mxu0 0
      %1930 = vmatpush1.bf16.msra.mxu0 0
      %1931 = vmatprep.subr.bf16.mxu0 0
      %1932 = vmatpush1.bf16.msra.mxu0 0
      %1933 = vmatprep.subr.bf16.mxu0 0
      %1934 = vmatpush1.bf16.msra.mxu0 0
      %1935 = vmatprep.subr.bf16.mxu0 0
      %1936 = vmatpush1.bf16.msra.mxu0 0
      %1937 = vmatprep.subr.bf16.mxu0 0
      %1938 = vmatpush1.bf16.msra.mxu0 0
      %1939 = vmatprep.subr.bf16.mxu0 0
      %1940 = vmatpush1.bf16.msra.mxu0 0
      %1941 = vmatprep.subr.bf16.mxu0 0
      %1942 = vmatpush1.bf16.msra.mxu0 0
      %1943 = vmatprep.subr.bf16.mxu0 0
      %1944 = vmatpush1.bf16.msra.mxu0 0
      %1945 = vmatprep.subr.bf16.mxu0 0
      %1946 = vmatpush1.bf16.msra.mxu0 0
      %1947 = vmatprep.subr.bf16.mxu0 0
      %1948 = vmatpush1.bf16.msra.mxu0 0
      %1949 = vmatprep.subr.bf16.mxu0 0
      %1950 = vmatpush1.bf16.msra.mxu0 0
      %1951 = vmatprep.subr.bf16.mxu0 0
      %1952 = vmatpush1.bf16.msra.mxu0 0
      %1953 = vmatprep.subr.bf16.mxu0 0
      %1954 = vmatpush1.bf16.msra.mxu0 0
      %1955 = vmatprep.subr.bf16.mxu0 0
      %1956 = vmatpush1.bf16.msra.mxu0 0
      %1957 = vmatprep.subr.bf16.mxu0 0
      %1958 = vmatpush1.bf16.msra.mxu0 0
      %1959 = vmatprep.mubr.bf16.mxu0 0
      %1960 = vmatmul.mubr.bf16.gmra.mrb[0].mxu0 %v1919
      %v1961 = vpop.f32.mrb[0].mxu0
      %v1962 = vadd.f32 0.0, %v1961
      %v1963 = vpop.f32.mrb[0].mxu0
      %v1964 = vpop.f32.mrb[0].mxu0
      %v1965 = vadd.f32 0.0, %v1964
      %v1966 = vpop.f32.mrb[0].mxu0
      %1967 = vmatprep.mubr.bf16.mxu0 0
      %1968 = vmatmul.mubr.bf16.gmra.mrb[0].mxu0 %v1922
      %v1969 = vpop.f32.mrb[0].mxu0
      %v1970 = vadd.f32 0.0, %v1969
      %v1971 = vpop.f32.mrb[0].mxu0
      %v1972 = vpop.f32.mrb[0].mxu0
      %v1973 = vadd.f32 0.0, %v1972
      %v1974 = vpop.f32.mrb[0].mxu0
      %1975 = vdwg.mxu0
      %v1976 = vadd.f32 %v1842, %v1962
      %v1977 = vadd.f32 %v1843, %v1965
      %v1978 = vadd.f32 %v1844, %v1970
      %v1979 = vadd.f32 %v1845, %v1973
      %v1980 = vpack.c.bf16 %v1977, %v1976
      %v1981 = vpack.c.bf16 %v1979, %v1978
      %v1984 = vunpack.c.l.b16 %v1980
      %v1985 = vunpack.c.h.b16 %v1980
      %v1986 = vunpack.c.l.b16 %v1981
      %v1987 = vunpack.c.h.b16 %v1981
      %v1988 = vpack.c.b16 %v1984, %v1984
      %v1989 = vpack.c.b16 %v1985, %v1985
      %v1990 = vpack.c.b16 %v1986, %v1986
      %v1991 = vpack.c.b16 %v1987, %v1987
      %1996 = vst [vmem:[%s242] sm:$0xf] %v1988
      %1997 = vst [vmem:[%s242 + $0x4] sm:$0xf] %v1989
      %1998 = vst [vmem:[%s242 + $0x8] sm:$0xf] %v1990
      %1999 = vst [vmem:[%s242 + $0xc] sm:$0xf] %v1991
      %v2000 = vadd.f32 %v1976, %v1977
      %v2001 = vadd.f32 %v2000, %v1978
      %v2002 = vadd.f32 %v2001, %v1979
      %v2003 = vrot.slane %v2002, 4
      %v2004 = vadd.f32 %v2002, %v2003
      %v2005 = vrot.slane %v2004, 2
      %v2006 = vadd.f32 %v2004, %v2005
      %v2007 = vrot.slane %v2006, 1
      %v2008 = vadd.f32 %v2006, %v2007
      %v2009 = vmul.f32 %v1976, %v1976
      %v2010 = vmul.f32 %v1977, %v1977
      %v2011 = vmul.f32 %v1978, %v1978
      %v2012 = vmul.f32 %v1979, %v1979
      %v2013 = vadd.f32 %v2009, %v2010
      %v2014 = vadd.f32 %v2013, %v2011
      %v2015 = vadd.f32 %v2014, %v2012
      %v2016 = vrot.slane %v2015, 4
      %v2017 = vadd.f32 %v2015, %v2016
      %v2018 = vrot.slane %v2017, 2
      %v2019 = vadd.f32 %v2017, %v2018
      %v2020 = vrot.slane %v2019, 1
      %v2021 = vadd.f32 %v2019, %v2020
      %2022 = vst [vmem:[%s252] sm:$0xff] %v2008
      %2023 = vst [vmem:[%s260] sm:$0xff] %v2021
      %s2024 = smul.u32 %s20, 2
      %s2025 = sadd.s32 %s2024, %s21
      %p2026 = scmp.lt.s32.totalorder %s2025, 3
      %s2027 = scalar_select %p2026, %s2025, 3
      %s2028 = smul.addr %s2027, 4
      %s2029 = smul.addr %s2028, 4
      %s2030 = scalar_lea.vmem %s2, %s2029
      %p2031 = scmp.lt.s32.totalorder %s20, 1
      %s2032 = scalar_select %p2031, %s20, 1
      %p2033 = scmp.lt.s32.totalorder %s21, 1
      %s2034 = scalar_select %p2033, %s21, 1
      %s2035 = smul.addr %s2032, 2
      %s2036 = sadd.s32 %s2034, %s2035
      %s2037 = smul.addr %s2036, 8
      %s2038 = scalar_lea.vmem %s3, %s2037
      %p2039 = scmp.lt.s32.totalorder %s20, 1
      %s2040 = scalar_select %p2039, %s20, 1
      %p2041 = scmp.lt.s32.totalorder %s21, 1
      %s2042 = scalar_select %p2041, %s21, 1
      %s2043 = smul.addr %s2040, 2
      %s2044 = sadd.s32 %s2042, %s2043
      %s2045 = smul.addr %s2044, 8
      %s2046 = scalar_lea.vmem %s4, %s2045
      // Predicated region
      $region29: #{encode_layer.2} parent=27 // pred_check
        %p2047 = pneg %p97
      $region30: #{encode_layer.2} parent=27 // pred_check_branch
        %2049 = sbr.rel (%p2047) target = $region32
      $region31: #{encode_layer.2} parent=27 // pred_region
        %s2050 = smul.u32 %s20, 2
        %s2051 = sadd.s32 %s2050, %s21
      $region32: #{encode_layer.2} parent=27 // pred_fallthru
        _
      // Predicated region
      $region33: #{encode_layer.2} parent=27 // pred_check
        %p2052 = pneg %p125
      $region34: #{encode_layer.2} parent=27 // pred_check_branch
        %2054 = sbr.rel (%p2052) target = $region36
      $region35: #{encode_layer.2} parent=27 // pred_region
        _
      $region36: #{encode_layer.2} parent=27 // pred_fallthru
        _
      // Predicated region
      $region37: #{encode_layer.2} parent=27 // pred_check
        %p2055 = pneg %p153
      $region38: #{encode_layer.2} parent=27 // pred_check_branch
        %2057 = sbr.rel (%p2055) target = $region40
      $region39: #{encode_layer.2} parent=27 // pred_region
        _
      $region40: #{encode_layer.2} parent=27 // pred_fallthru
        _
    $region28: #{encode_layer.2} parent=5 // pred_fallthru
      _
    %p2058 = scmp.le.s32.totalorder 2, %s11
    // Predicated region
    $region41: #{encode_layer.2} parent=5 // pred_check
      %p2059 = pneg %p2058
    $region42: #{encode_layer.2} parent=5 // pred_check_branch
      %2061 = sbr.rel (%p2059) target = $region44
    $region43: #{encode_layer.2} parent=5 // pred_region
      %s2062 = ssub.s32 %s11, 2
      // Predicated region
      $region45: #{encode_layer.2} parent=43 // pred_check
        %p2063 = pneg %p103
      $region46: #{encode_layer.2} parent=43 // pred_check_branch
        %2065 = sbr.rel (%p2063) target = $region48
      $region47: #{encode_layer.2} parent=43 // pred_region
        %s2066 = smul.u32 %s22, 2
        %s2067 = sadd.s32 %s2066, %s23
        %p2068 = scmp.lt.s32.totalorder %s2067, 3
        %s2069 = scalar_select %p2068, %s2067, 3
        %s2070 = smul.addr %s2069, 4
        %s2071 = smul.addr %s2070, 4
        %s2072 = scalar_lea.vmem %s2, %s2071
      $region48: #{encode_layer.2} parent=43 // pred_fallthru
        _
      // Predicated region
      $region49: #{encode_layer.2} parent=43 // pred_check
        %p2073 = pneg %p131
      $region50: #{encode_layer.2} parent=43 // pred_check_branch
        %2075 = sbr.rel (%p2073) target = $region52
      $region51: #{encode_layer.2} parent=43 // pred_region
        %p2076 = scmp.lt.s32.totalorder %s22, 1
        %s2077 = scalar_select %p2076, %s22, 1
        %p2078 = scmp.lt.s32.totalorder %s23, 1
        %s2079 = scalar_select %p2078, %s23, 1
        %s2080 = smul.addr %s2077, 2
        %s2081 = sadd.s32 %s2079, %s2080
        %s2082 = smul.addr %s2081, 8
        %s2083 = scalar_lea.vmem %s3, %s2082
      $region52: #{encode_layer.2} parent=43 // pred_fallthru
        _
      // Predicated region
      $region53: #{encode_layer.2} parent=43 // pred_check
        %p2084 = pneg %p159
      $region54: #{encode_layer.2} parent=43 // pred_check_branch
        %2086 = sbr.rel (%p2084) target = $region56
      $region55: #{encode_layer.2} parent=43 // pred_region
        %p2087 = scmp.lt.s32.totalorder %s22, 1
        %s2088 = scalar_select %p2087, %s22, 1
        %p2089 = scmp.lt.s32.totalorder %s23, 1
        %s2090 = scalar_select %p2089, %s23, 1
        %s2091 = smul.addr %s2088, 2
        %s2092 = sadd.s32 %s2090, %s2091
        %s2093 = smul.addr %s2092, 8
        %s2094 = scalar_lea.vmem %s4, %s2093
      $region56: #{encode_layer.2} parent=43 // pred_fallthru
        _
    $region44: #{encode_layer.2} parent=5 // pred_fallthru
      _
  $region6: #{encode_layer.2} parent=0 // loop_footer
    %s15 = sadd.s32 1, %s11
  $region7: #{encode_layer.2} parent=0 // loop_footer_branch
    %10 = sbr.rel target = $region3
  $region8: #{encode_layer.2} parent=0 // loop_exit
    _

</llo_original>
